<compile_context>
chip_gen: v7x
topology: tpu7x:2x2x1
jax: 0.10.0
libtpu: 0.0.40
codegen_flags: <defaults>
</compile_context>

<pallas_src>
import numpy as np
import jax
import jax.numpy as jnp
from jax import lax
from jax.experimental import pallas as pl
from jax.experimental.pallas import tpu as pltpu

EPS = 1e-5  # nn.GroupNorm default eps


def _gn1(x, gamma, beta):
    """GroupNorm with a single group over the channel (last) axis, per row."""
    mu = jnp.mean(x, axis=-1, keepdims=True)
    var = jnp.mean((x - mu) ** 2, axis=-1, keepdims=True)
    return (x - mu) * lax.rsqrt(var + EPS) * gamma + beta


def _round_up(x, m):
    return ((x + m - 1) // m) * m


# ---------------------------------------------------------------------------
# Kernel 1: per-edge context features
#   refs: dist, agt_hi, ctx_wi,
#         vec_ctx (7, n_ctx)  rows = [wd1_row0, wd1_row1, b_d1, g_d2, be_d2, g_q, be_q]
#         w_d2 (n_ctx,n_ctx), w_q (n_agt,n_ctx), w_c1 (3,n_ctx,n_agt),
#         w_c2 (n_agt,n_agt), vec_agt (2, n_agt) rows = [g_c1, be_c1]
# ---------------------------------------------------------------------------
def edge_kernel(dist_ref, agt_hi_ref, ctx_wi_ref,
                vec_ctx_ref, w_d2_ref, w_q_ref, w_c1_ref, w_c2_ref, vec_agt_ref,
                out_ref):
    f32 = jnp.float32
    vc = vec_ctx_ref[...]
    wd1_0, wd1_1 = vc[0:1, :], vc[1:2, :]
    b_d1, g_d2, be_d2 = vc[2:3, :], vc[3:4, :], vc[4:5, :]
    g_q, be_q = vc[5:6, :], vc[6:7, :]
    va = vec_agt_ref[...]
    g_c1, be_c1 = va[0:1, :], va[1:2, :]

    dist = dist_ref[...]
    # dist branch: Linear(2, n_ctx)+bias as VPU broadcast-FMAs (K=2 MXU pass
    # would waste a full push/pop round-trip), then ReLU -> Linear -> GN -> ReLU
    d = dist[:, 0:1] * wd1_0 + dist[:, 1:2] * wd1_1 + b_d1
    d = jnp.maximum(d, 0.0)
    d = jnp.dot(d, w_d2_ref[...], preferred_element_type=f32)
    d = jnp.maximum(_gn1(d, g_d2, be_d2), 0.0)

    # query branch: Linear(n_agt, n_ctx, no bias) -> GN(1) -> ReLU
    q = jnp.dot(agt_hi_ref[...], w_q_ref[...], preferred_element_type=f32)
    q = jnp.maximum(_gn1(q, g_q, be_q), 0.0)

    # ctx branch: concat(d, q, ctx) @ Wc1^T  ==  d@Wc1d + q@Wc1q + ctx@Wc1c
    c = (jnp.dot(d, w_c1_ref[0], preferred_element_type=f32)
         + jnp.dot(q, w_c1_ref[1], preferred_element_type=f32)
         + jnp.dot(ctx_wi_ref[...], w_c1_ref[2], preferred_element_type=f32))
    c = jnp.maximum(_gn1(c, g_c1, be_c1), 0.0)

    # final nn.Linear(n_agt, n_agt, bias=False)
    out_ref[...] = jnp.dot(c, w_c2_ref[...], preferred_element_type=f32)


# ---------------------------------------------------------------------------
# Kernel 2: per-agent output path (after scatter-add of edge features)
#   vec (4, n_agt) rows = [g_n, be_n, g_l, be_l]
# ---------------------------------------------------------------------------
def agt_kernel(agts_ref, added_ref, wagt_ref, wl_ref, vec_ref, out_ref):
    f32 = jnp.float32
    v = vec_ref[...]
    g_n, be_n, g_l, be_l = v[0:1, :], v[1:2, :], v[2:3, :], v[3:4, :]

    res = agts_ref[...]
    # self.agt(agts) + index_add'ed ctx
    x = jnp.dot(res, wagt_ref[...], preferred_element_type=f32) + added_ref[...]
    # self.norm -> relu
    x = jnp.maximum(_gn1(x, g_n, be_n), 0.0)
    # self.linear (Linear: no-bias matmul + GN, act=False)
    x = jnp.dot(x, wl_ref[...], preferred_element_type=f32)
    x = _gn1(x, g_l, be_l)
    # residual + relu
    out_ref[...] = jnp.maximum(x + res, 0.0)


# ---------------------------------------------------------------------------
# Wrappers
# ---------------------------------------------------------------------------
def _full_spec(shape):
    return pl.BlockSpec(shape, lambda i: (0,) * len(shape))


def _pick_tile(n_rows, tile_default):
    # Big tiles amortize per-step overhead / feed the MXU; clamp so tiny demo
    # problems don't pad to thousands of rows.  Row dim must be a multiple of 8.
    return min(tile_default, _round_up(max(n_rows, 1), 8))


def edge_forward(dist, agt_hi, ctx_wi, p, tile_m=1024):
    M = dist.shape[0]
    n_agt = p["w_agt"].shape[0]
    tile = _pick_tile(M, tile_m)
    M_pad = _round_up(max(M, 1), tile)
    pad = M_pad - M
    dist = jnp.pad(dist, ((0, pad), (0, 0)))
    agt_hi = jnp.pad(agt_hi, ((0, pad), (0, 0)))
    ctx_wi = jnp.pad(ctx_wi, ((0, pad), (0, 0)))

    def row(c):
        return pl.BlockSpec((tile, c), lambda i: (i, 0))

    # stacked small parameters (weights pre-transposed to (in, out))
    vec_ctx = jnp.concatenate(
        [p["w_d1"].T, p["b_d1"], p["g_d2"], p["be_d2"], p["g_q"], p["be_q"]],
        axis=0)                                                   # (7, n_ctx)
    vec_agt = jnp.concatenate([p["g_c1"], p["be_c1"]], axis=0)    # (2, n_agt)
    w_c1 = jnp.stack([p["w_c1d"].T, p["w_c1q"].T, p["w_c1c"].T], axis=0)
    weights = [vec_ctx, p["w_d2"].T, p["w_q"].T, w_c1, p["w_c2"].T, vec_agt]

    out = pl.pallas_call(
        edge_kernel,
        out_shape=jax.ShapeDtypeStruct((M_pad, n_agt), jnp.float32),
        grid=(M_pad // tile,),
        in_specs=[row(dist.shape[1]), row(agt_hi.shape[1]), row(ctx_wi.shape[1])]
                 + [_full_spec(w.shape) for w in weights],
        out_specs=row(n_agt),
        compiler_params=pltpu.CompilerParams(dimension_semantics=("parallel",)),
    )(dist, agt_hi, ctx_wi, *weights)
    return out[:M]


def agt_forward(agts, added, p, tile_n=1024):
    N, n_agt = agts.shape
    tile = _pick_tile(N, tile_n)
    N_pad = _round_up(max(N, 1), tile)
    pad = N_pad - N
    agts_p = jnp.pad(agts, ((0, pad), (0, 0)))
    added_p = jnp.pad(added, ((0, pad), (0, 0)))

    row = pl.BlockSpec((tile, n_agt), lambda i: (i, 0))
    vec = jnp.concatenate([p["g_n"], p["be_n"], p["g_l"], p["be_l"]], axis=0)
    weights = [p["w_agt"].T, p["w_l"].T, vec]

    out = pl.pallas_call(
        agt_kernel,
        out_shape=jax.ShapeDtypeStruct((N_pad, n_agt), jnp.float32),
        grid=(N_pad // tile,),
        in_specs=[row, row] + [_full_spec(w.shape) for w in weights],
        out_specs=row,
        compiler_params=pltpu.CompilerParams(dimension_semantics=("parallel",)),
    )(agts_p, added_p, *weights)
    return out[:N]


@jax.jit
def att_forward(agts, agt_ctrs_cat, ctx, ctx_ctrs_cat, hi, wi, p):
    # glue: data-dependent gathers (fused into the same jit as the kernels)
    dist = agt_ctrs_cat[hi] - ctx_ctrs_cat[wi]
    agt_hi = agts[hi]
    ctx_wi = ctx[wi]
    ctx_out = edge_forward(dist, agt_hi, ctx_wi, p)
    # glue: index_add_ (scatter-add) of per-edge features onto agent rows
    added = jnp.zeros_like(agts).at[hi].add(ctx_out)
    return agt_forward(agts, added, p)


# ---------------------------------------------------------------------------
# Pure-JAX reference (mirrors the PyTorch forward exactly)
# ---------------------------------------------------------------------------
def ref_forward(agts, agt_ctrs_cat, ctx, ctx_ctrs_cat, hi, wi, p):
    dist = agt_ctrs_cat[hi] - ctx_ctrs_cat[wi]
    d = jnp.maximum(dist @ p["w_d1"].T + p["b_d1"], 0.0)
    d = d @ p["w_d2"].T
    d = jnp.maximum(_gn1(d, p["g_d2"], p["be_d2"]), 0.0)
    q = agts[hi] @ p["w_q"].T
    q = jnp.maximum(_gn1(q, p["g_q"], p["be_q"]), 0.0)
    cat = jnp.concatenate([d, q, ctx[wi]], axis=1)
    w_c1 = jnp.concatenate([p["w_c1d"], p["w_c1q"], p["w_c1c"]], axis=1)
    c = cat @ w_c1.T
    c = jnp.maximum(_gn1(c, p["g_c1"], p["be_c1"]), 0.0)
    c = c @ p["w_c2"].T
    x = agts @ p["w_agt"].T
    x = x.at[hi].add(c)
    x = jnp.maximum(_gn1(x, p["g_n"], p["be_n"]), 0.0)
    x = x @ p["w_l"].T
    x = _gn1(x, p["g_l"], p["be_l"])
    return jnp.maximum(x + agts, 0.0)


# ---------------------------------------------------------------------------
# Deterministic parameter init (PyTorch [out, in] convention for weights)
# ---------------------------------------------------------------------------
def init_params(key, n_agt, n_ctx):
    ks = jax.random.split(key, 18)
    s = 0.1
    nrm = lambda k, shp: (s * jax.random.normal(k, shp)).astype(jnp.float32)
    aff = lambda k, c: (1.0 + s * jax.random.normal(k, (1, c))).astype(jnp.float32)
    w_c1 = nrm(ks[8], (n_agt, 3 * n_ctx))
    return {
        # dist = Seq(nn.Linear(2,n_ctx), ReLU, Linear(n_ctx,n_ctx,GN,ng=1))
        "w_d1": nrm(ks[0], (n_ctx, 2)),
        "b_d1": nrm(ks[1], (1, n_ctx)),
        "w_d2": nrm(ks[2], (n_ctx, n_ctx)),
        "g_d2": aff(ks[3], n_ctx),
        "be_d2": nrm(ks[4], (1, n_ctx)),
        # query = Linear(n_agt, n_ctx, GN, ng=1)
        "w_q": nrm(ks[5], (n_ctx, n_agt)),
        "g_q": aff(ks[6], n_ctx),
        "be_q": nrm(ks[7], (1, n_ctx)),
        # ctx = Seq(Linear(3*n_ctx, n_agt, GN, ng=1), nn.Linear(n_agt, n_agt, bias=False))
        "w_c1d": w_c1[:, 0 * n_ctx:1 * n_ctx],
        "w_c1q": w_c1[:, 1 * n_ctx:2 * n_ctx],
        "w_c1c": w_c1[:, 2 * n_ctx:3 * n_ctx],
        "g_c1": aff(ks[9], n_agt),
        "be_c1": nrm(ks[10], (1, n_agt)),
        "w_c2": nrm(ks[11], (n_agt, n_agt)),
        # agt = nn.Linear(n_agt, n_agt, bias=False)
        "w_agt": nrm(ks[12], (n_agt, n_agt)),
        # norm = nn.GroupNorm(1, n_agt)
        "g_n": aff(ks[13], n_agt),
        "be_n": nrm(ks[14], (1, n_agt)),
        # linear = Linear(n_agt, n_agt, GN, ng=1, act=False)
        "w_l": nrm(ks[15], (n_agt, n_agt)),
        "g_l": aff(ks[16], n_agt),
        "be_l": nrm(ks[17], (1, n_agt)),
    }


if __name__ == "__main__":
    key = jax.random.PRNGKey(0)
    n_agt, n_ctx = 32, 16
    agt_counts = [5, 6]    # agents per batch element
    ctx_counts = [7, 4]    # context nodes per batch element
    dist_th = 10.0

    kp, ka, kc, kac, kcc = jax.random.split(key, 5)
    params = init_params(kp, n_agt, n_ctx)

    N = sum(agt_counts)
    W = sum(ctx_counts)
    agts = (0.5 * jax.random.normal(ka, (N, n_agt))).astype(jnp.float32)
    ctx = (0.5 * jax.random.normal(kc, (W, n_ctx))).astype(jnp.float32)
    agt_ctrs_cat = (2.0 * jax.random.uniform(kac, (N, 2))).astype(jnp.float32)
    ctx_ctrs_cat = (2.0 * jax.random.uniform(kcc, (W, 2))).astype(jnp.float32)

    # host-side edge-index construction (mirrors torch.nonzero loop, including
    # the upstream quirk where counters only advance for non-empty batches)
    agt_ctrs_np = np.asarray(agt_ctrs_cat)
    ctx_ctrs_np = np.asarray(ctx_ctrs_cat)
    hi_list, wi_list = [], []
    hi_count = wi_count = 0
    a_off = np.cumsum([0] + agt_counts)
    c_off = np.cumsum([0] + ctx_counts)
    for i in range(len(agt_counts)):
        ac = agt_ctrs_np[a_off[i]:a_off[i + 1]]
        cc = ctx_ctrs_np[c_off[i]:c_off[i + 1]]
        d = ac[:, None, :] - cc[None, :, :]
        d = np.sqrt((d ** 2).sum(2))
        r, c = np.nonzero(d <= dist_th)
        if len(r) == 0:
            continue
        hi_list.append(r + hi_count)
        wi_list.append(c + wi_count)
        hi_count += agt_counts[i]
        wi_count += ctx_counts[i]
    hi = jnp.asarray(np.concatenate(hi_list).astype(np.int32))
    wi = jnp.asarray(np.concatenate(wi_list).astype(np.int32))

    out = att_forward(agts, agt_ctrs_cat, ctx, ctx_ctrs_cat, hi, wi, params)
    out = jax.block_until_ready(out)

    ref = jax.block_until_ready(
        ref_forward(agts, agt_ctrs_cat, ctx, ctx_ctrs_cat, hi, wi, params))
    np.testing.assert_allclose(np.asarray(out), np.asarray(ref),
                               rtol=5e-2, atol=5e-2)
    print("KERNEL_OK")
</pallas_src>

<mosaic_0001>
module attributes {stable_mosaic.version = 11 : i64} {
  func.func @edge_kernel(%arg0: i32, %arg1: memref<64x2xf32, #tpu.memory_space<vmem>>, %arg2: memref<64x32xf32, #tpu.memory_space<vmem>>, %arg3: memref<64x16xf32, #tpu.memory_space<vmem>>, %arg4: memref<7x16xf32, #tpu.memory_space<vmem>>, %arg5: memref<16x16xf32, #tpu.memory_space<vmem>>, %arg6: memref<32x16xf32, #tpu.memory_space<vmem>>, %arg7: memref<3x16x32xf32, #tpu.memory_space<vmem>>, %arg8: memref<32x32xf32, #tpu.memory_space<vmem>>, %arg9: memref<2x32xf32, #tpu.memory_space<vmem>>, %arg10: memref<64x32xf32, #tpu.memory_space<vmem>>) attributes {dimension_semantics = [#tpu.dimension_semantics<parallel>], iteration_bounds = array<i64: 1>, scalar_prefetch = 0 : i64, scratch_operands = 0 : i64, tpu.core_type = #tpu.core_type<tc>, window_params = [{transform_indices = @transform_0, window_bounds = array<i64: 64, 2>}, {transform_indices = @transform_1, window_bounds = array<i64: 64, 32>}, {transform_indices = @transform_2, window_bounds = array<i64: 64, 16>}, {pipeline_mode = #tpu.pipeline_mode<synchronous>, transform_indices = @transform_3, window_bounds = array<i64: 7, 16>}, {pipeline_mode = #tpu.pipeline_mode<synchronous>, transform_indices = @transform_4, window_bounds = array<i64: 16, 16>}, {pipeline_mode = #tpu.pipeline_mode<synchronous>, transform_indices = @transform_5, window_bounds = array<i64: 32, 16>}, {pipeline_mode = #tpu.pipeline_mode<synchronous>, transform_indices = @transform_6, window_bounds = array<i64: 3, 16, 32>}, {pipeline_mode = #tpu.pipeline_mode<synchronous>, transform_indices = @transform_7, window_bounds = array<i64: 32, 32>}, {pipeline_mode = #tpu.pipeline_mode<synchronous>, transform_indices = @transform_8, window_bounds = array<i64: 2, 32>}, {transform_indices = @transform_9, window_bounds = array<i64: 64, 32>}]} {
    %c0 = arith.constant 0 : index
    %c0_0 = arith.constant 0 : index
    %0 = vector.load %arg4[%c0, %c0_0] : memref<7x16xf32, #tpu.memory_space<vmem>>, vector<7x16xf32>
    %1 = vector.extract_strided_slice %0 {offsets = [0, 0], sizes = [1, 16], strides = [1, 1]} : vector<7x16xf32> to vector<1x16xf32>
    %2 = vector.extract_strided_slice %0 {offsets = [1, 0], sizes = [1, 16], strides = [1, 1]} : vector<7x16xf32> to vector<1x16xf32>
    %3 = vector.extract_strided_slice %0 {offsets = [2, 0], sizes = [1, 16], strides = [1, 1]} : vector<7x16xf32> to vector<1x16xf32>
    %4 = vector.extract_strided_slice %0 {offsets = [3, 0], sizes = [1, 16], strides = [1, 1]} : vector<7x16xf32> to vector<1x16xf32>
    %5 = vector.extract_strided_slice %0 {offsets = [4, 0], sizes = [1, 16], strides = [1, 1]} : vector<7x16xf32> to vector<1x16xf32>
    %6 = vector.extract_strided_slice %0 {offsets = [5, 0], sizes = [1, 16], strides = [1, 1]} : vector<7x16xf32> to vector<1x16xf32>
    %7 = vector.extract_strided_slice %0 {offsets = [6, 0], sizes = [1, 16], strides = [1, 1]} : vector<7x16xf32> to vector<1x16xf32>
    %c0_1 = arith.constant 0 : index
    %c0_2 = arith.constant 0 : index
    %8 = vector.load %arg9[%c0_1, %c0_2] : memref<2x32xf32, #tpu.memory_space<vmem>>, vector<2x32xf32>
    %9 = vector.extract_strided_slice %8 {offsets = [0, 0], sizes = [1, 32], strides = [1, 1]} : vector<2x32xf32> to vector<1x32xf32>
    %10 = vector.extract_strided_slice %8 {offsets = [1, 0], sizes = [1, 32], strides = [1, 1]} : vector<2x32xf32> to vector<1x32xf32>
    %c0_3 = arith.constant 0 : index
    %c0_4 = arith.constant 0 : index
    %11 = vector.load %arg1[%c0_3, %c0_4] : memref<64x2xf32, #tpu.memory_space<vmem>>, vector<64x2xf32>
    %12 = vector.extract_strided_slice %11 {offsets = [0, 0], sizes = [64, 1], strides = [1, 1]} : vector<64x2xf32> to vector<64x1xf32>
    %13 = vector.broadcast %12 : vector<64x1xf32> to vector<64x16xf32>
    %14 = vector.broadcast %1 : vector<1x16xf32> to vector<64x16xf32>
    %15 = arith.mulf %13, %14 : vector<64x16xf32>
    %16 = vector.extract_strided_slice %11 {offsets = [0, 1], sizes = [64, 1], strides = [1, 1]} : vector<64x2xf32> to vector<64x1xf32>
    %17 = vector.broadcast %16 : vector<64x1xf32> to vector<64x16xf32>
    %18 = vector.broadcast %2 : vector<1x16xf32> to vector<64x16xf32>
    %19 = arith.mulf %17, %18 : vector<64x16xf32>
    %20 = arith.addf %15, %19 : vector<64x16xf32>
    %21 = vector.broadcast %3 : vector<1x16xf32> to vector<64x16xf32>
    %22 = arith.addf %20, %21 : vector<64x16xf32>
    %cst = arith.constant 0.000000e+00 : f32
    %23 = vector.broadcast %cst : f32 to vector<64x16xf32>
    %24 = arith.maximumf %22, %23 : vector<64x16xf32>
    %c0_5 = arith.constant 0 : index
    %c0_6 = arith.constant 0 : index
    %25 = vector.load %arg5[%c0_5, %c0_6] : memref<16x16xf32, #tpu.memory_space<vmem>>, vector<16x16xf32>
    %cst_7 = arith.constant dense<0.000000e+00> : vector<64x16xf32>
    %26 = tpu.matmul %24, %25, %cst_7 {dimension_numbers = #tpu.dot_dimension_numbers<[1], [0], [0], [1], [0, 0, 1, 1], [], []>} : vector<64x16xf32>, vector<16x16xf32>, vector<64x16xf32> -> vector<64x16xf32>
    %cst_8 = arith.constant dense<0.000000e+00> : vector<64xf32>
    %27 = vector.multi_reduction <add>, %26, %cst_8 [1] : vector<64x16xf32> to vector<64xf32>
    %28 = vector.shape_cast %27 : vector<64xf32> to vector<64x1xf32>
    %cst_9 = arith.constant 1.600000e+01 : f32
    %29 = vector.broadcast %cst_9 : f32 to vector<64x1xf32>
    %30 = arith.divf %28, %29 : vector<64x1xf32>
    %31 = vector.broadcast %30 : vector<64x1xf32> to vector<64x16xf32>
    %32 = arith.subf %26, %31 : vector<64x16xf32>
    %33 = arith.mulf %32, %32 : vector<64x16xf32>
    %cst_10 = arith.constant dense<0.000000e+00> : vector<64xf32>
    %34 = vector.multi_reduction <add>, %33, %cst_10 [1] : vector<64x16xf32> to vector<64xf32>
    %35 = vector.shape_cast %34 : vector<64xf32> to vector<64x1xf32>
    %cst_11 = arith.constant 1.600000e+01 : f32
    %36 = vector.broadcast %cst_11 : f32 to vector<64x1xf32>
    %37 = arith.divf %35, %36 : vector<64x1xf32>
    %38 = vector.broadcast %30 : vector<64x1xf32> to vector<64x16xf32>
    %39 = arith.subf %26, %38 : vector<64x16xf32>
    %cst_12 = arith.constant 9.99999974E-6 : f32
    %40 = vector.broadcast %cst_12 : f32 to vector<64x1xf32>
    %41 = arith.addf %37, %40 : vector<64x1xf32>
    %42 = math.rsqrt %41 : vector<64x1xf32>
    %43 = vector.broadcast %42 : vector<64x1xf32> to vector<64x16xf32>
    %44 = arith.mulf %39, %43 : vector<64x16xf32>
    %45 = vector.broadcast %4 : vector<1x16xf32> to vector<64x16xf32>
    %46 = arith.mulf %44, %45 : vector<64x16xf32>
    %47 = vector.broadcast %5 : vector<1x16xf32> to vector<64x16xf32>
    %48 = arith.addf %46, %47 : vector<64x16xf32>
    %cst_13 = arith.constant 0.000000e+00 : f32
    %49 = vector.broadcast %cst_13 : f32 to vector<64x16xf32>
    %50 = arith.maximumf %48, %49 : vector<64x16xf32>
    %c0_14 = arith.constant 0 : index
    %c0_15 = arith.constant 0 : index
    %51 = vector.load %arg2[%c0_14, %c0_15] : memref<64x32xf32, #tpu.memory_space<vmem>>, vector<64x32xf32>
    %c0_16 = arith.constant 0 : index
    %c0_17 = arith.constant 0 : index
    %52 = vector.load %arg6[%c0_16, %c0_17] : memref<32x16xf32, #tpu.memory_space<vmem>>, vector<32x16xf32>
    %cst_18 = arith.constant dense<0.000000e+00> : vector<64x16xf32>
    %53 = tpu.matmul %51, %52, %cst_18 {dimension_numbers = #tpu.dot_dimension_numbers<[1], [0], [0], [1], [0, 0, 1, 1], [], []>} : vector<64x32xf32>, vector<32x16xf32>, vector<64x16xf32> -> vector<64x16xf32>
    %cst_19 = arith.constant dense<0.000000e+00> : vector<64xf32>
    %54 = vector.multi_reduction <add>, %53, %cst_19 [1] : vector<64x16xf32> to vector<64xf32>
    %55 = vector.shape_cast %54 : vector<64xf32> to vector<64x1xf32>
    %cst_20 = arith.constant 1.600000e+01 : f32
    %56 = vector.broadcast %cst_20 : f32 to vector<64x1xf32>
    %57 = arith.divf %55, %56 : vector<64x1xf32>
    %58 = vector.broadcast %57 : vector<64x1xf32> to vector<64x16xf32>
    %59 = arith.subf %53, %58 : vector<64x16xf32>
    %60 = arith.mulf %59, %59 : vector<64x16xf32>
    %cst_21 = arith.constant dense<0.000000e+00> : vector<64xf32>
    %61 = vector.multi_reduction <add>, %60, %cst_21 [1] : vector<64x16xf32> to vector<64xf32>
    %62 = vector.shape_cast %61 : vector<64xf32> to vector<64x1xf32>
    %cst_22 = arith.constant 1.600000e+01 : f32
    %63 = vector.broadcast %cst_22 : f32 to vector<64x1xf32>
    %64 = arith.divf %62, %63 : vector<64x1xf32>
    %65 = vector.broadcast %57 : vector<64x1xf32> to vector<64x16xf32>
    %66 = arith.subf %53, %65 : vector<64x16xf32>
    %cst_23 = arith.constant 9.99999974E-6 : f32
    %67 = vector.broadcast %cst_23 : f32 to vector<64x1xf32>
    %68 = arith.addf %64, %67 : vector<64x1xf32>
    %69 = math.rsqrt %68 : vector<64x1xf32>
    %70 = vector.broadcast %69 : vector<64x1xf32> to vector<64x16xf32>
    %71 = arith.mulf %66, %70 : vector<64x16xf32>
    %72 = vector.broadcast %6 : vector<1x16xf32> to vector<64x16xf32>
    %73 = arith.mulf %71, %72 : vector<64x16xf32>
    %74 = vector.broadcast %7 : vector<1x16xf32> to vector<64x16xf32>
    %75 = arith.addf %73, %74 : vector<64x16xf32>
    %cst_24 = arith.constant 0.000000e+00 : f32
    %76 = vector.broadcast %cst_24 : f32 to vector<64x16xf32>
    %77 = arith.maximumf %75, %76 : vector<64x16xf32>
    %c0_25 = arith.constant 0 : index
    %c0_26 = arith.constant 0 : index
    %c0_27 = arith.constant 0 : index
    %78 = vector.load %arg7[%c0_25, %c0_26, %c0_27] : memref<3x16x32xf32, #tpu.memory_space<vmem>>, vector<1x16x32xf32>
    %79 = vector.shape_cast %78 : vector<1x16x32xf32> to vector<16x32xf32>
    %cst_28 = arith.constant dense<0.000000e+00> : vector<64x32xf32>
    %80 = tpu.matmul %50, %79, %cst_28 {dimension_numbers = #tpu.dot_dimension_numbers<[1], [0], [0], [1], [0, 0, 1, 1], [], []>} : vector<64x16xf32>, vector<16x32xf32>, vector<64x32xf32> -> vector<64x32xf32>
    %c1 = arith.constant 1 : index
    %c0_29 = arith.constant 0 : index
    %c0_30 = arith.constant 0 : index
    %81 = vector.load %arg7[%c1, %c0_29, %c0_30] : memref<3x16x32xf32, #tpu.memory_space<vmem>>, vector<1x16x32xf32>
    %82 = vector.shape_cast %81 : vector<1x16x32xf32> to vector<16x32xf32>
    %cst_31 = arith.constant dense<0.000000e+00> : vector<64x32xf32>
    %83 = tpu.matmul %77, %82, %cst_31 {dimension_numbers = #tpu.dot_dimension_numbers<[1], [0], [0], [1], [0, 0, 1, 1], [], []>} : vector<64x16xf32>, vector<16x32xf32>, vector<64x32xf32> -> vector<64x32xf32>
    %84 = arith.addf %80, %83 : vector<64x32xf32>
    %c0_32 = arith.constant 0 : index
    %c0_33 = arith.constant 0 : index
    %85 = vector.load %arg3[%c0_32, %c0_33] : memref<64x16xf32, #tpu.memory_space<vmem>>, vector<64x16xf32>
    %c2 = arith.constant 2 : index
    %c0_34 = arith.constant 0 : index
    %c0_35 = arith.constant 0 : index
    %86 = vector.load %arg7[%c2, %c0_34, %c0_35] : memref<3x16x32xf32, #tpu.memory_space<vmem>>, vector<1x16x32xf32>
    %87 = vector.shape_cast %86 : vector<1x16x32xf32> to vector<16x32xf32>
    %cst_36 = arith.constant dense<0.000000e+00> : vector<64x32xf32>
    %88 = tpu.matmul %85, %87, %cst_36 {dimension_numbers = #tpu.dot_dimension_numbers<[1], [0], [0], [1], [0, 0, 1, 1], [], []>} : vector<64x16xf32>, vector<16x32xf32>, vector<64x32xf32> -> vector<64x32xf32>
    %89 = arith.addf %84, %88 : vector<64x32xf32>
    %cst_37 = arith.constant dense<0.000000e+00> : vector<64xf32>
    %90 = vector.multi_reduction <add>, %89, %cst_37 [1] : vector<64x32xf32> to vector<64xf32>
    %91 = vector.shape_cast %90 : vector<64xf32> to vector<64x1xf32>
    %cst_38 = arith.constant 3.200000e+01 : f32
    %92 = vector.broadcast %cst_38 : f32 to vector<64x1xf32>
    %93 = arith.divf %91, %92 : vector<64x1xf32>
    %94 = vector.broadcast %93 : vector<64x1xf32> to vector<64x32xf32>
    %95 = arith.subf %89, %94 : vector<64x32xf32>
    %96 = arith.mulf %95, %95 : vector<64x32xf32>
    %cst_39 = arith.constant dense<0.000000e+00> : vector<64xf32>
    %97 = vector.multi_reduction <add>, %96, %cst_39 [1] : vector<64x32xf32> to vector<64xf32>
    %98 = vector.shape_cast %97 : vector<64xf32> to vector<64x1xf32>
    %cst_40 = arith.constant 3.200000e+01 : f32
    %99 = vector.broadcast %cst_40 : f32 to vector<64x1xf32>
    %100 = arith.divf %98, %99 : vector<64x1xf32>
    %101 = vector.broadcast %93 : vector<64x1xf32> to vector<64x32xf32>
    %102 = arith.subf %89, %101 : vector<64x32xf32>
    %cst_41 = arith.constant 9.99999974E-6 : f32
    %103 = vector.broadcast %cst_41 : f32 to vector<64x1xf32>
    %104 = arith.addf %100, %103 : vector<64x1xf32>
    %105 = math.rsqrt %104 : vector<64x1xf32>
    %106 = vector.broadcast %105 : vector<64x1xf32> to vector<64x32xf32>
    %107 = arith.mulf %102, %106 : vector<64x32xf32>
    %108 = vector.broadcast %9 : vector<1x32xf32> to vector<64x32xf32>
    %109 = arith.mulf %107, %108 : vector<64x32xf32>
    %110 = vector.broadcast %10 : vector<1x32xf32> to vector<64x32xf32>
    %111 = arith.addf %109, %110 : vector<64x32xf32>
    %cst_42 = arith.constant 0.000000e+00 : f32
    %112 = vector.broadcast %cst_42 : f32 to vector<64x32xf32>
    %113 = arith.maximumf %111, %112 : vector<64x32xf32>
    %c0_43 = arith.constant 0 : index
    %c0_44 = arith.constant 0 : index
    %114 = vector.load %arg8[%c0_43, %c0_44] : memref<32x32xf32, #tpu.memory_space<vmem>>, vector<32x32xf32>
    %cst_45 = arith.constant dense<0.000000e+00> : vector<64x32xf32>
    %115 = tpu.matmul %113, %114, %cst_45 {dimension_numbers = #tpu.dot_dimension_numbers<[1], [0], [0], [1], [0, 0, 1, 1], [], []>} : vector<64x32xf32>, vector<32x32xf32>, vector<64x32xf32> -> vector<64x32xf32>
    %c0_46 = arith.constant 0 : index
    %c0_47 = arith.constant 0 : index
    %116 = vector.load %arg10[%c0_46, %c0_47] : memref<64x32xf32, #tpu.memory_space<vmem>>, vector<64x32xf32>
    tpu.vector_store %arg10[%c0_46, %c0_47], %115 {strides = array<i32>} : memref<64x32xf32, #tpu.memory_space<vmem>>, vector<64x32xf32>,
    return
  }
  func.func @transform_0(%arg0: i32) -> (i32, i32) {
    %c0_i32 = arith.constant 0 : i32
    %c0_i32_0 = arith.constant 0 : i32
    return %arg0, %c0_i32 : i32, i32
  }
  func.func @transform_1(%arg0: i32) -> (i32, i32) {
    %c0_i32 = arith.constant 0 : i32
    %c0_i32_0 = arith.constant 0 : i32
    return %arg0, %c0_i32 : i32, i32
  }
  func.func @transform_2(%arg0: i32) -> (i32, i32) {
    %c0_i32 = arith.constant 0 : i32
    %c0_i32_0 = arith.constant 0 : i32
    return %arg0, %c0_i32 : i32, i32
  }
  func.func @transform_3(%arg0: i32) -> (i32, i32) {
    %c0_i32 = arith.constant 0 : i32
    %c0_i32_0 = arith.constant 0 : i32
    %c0_i32_1 = arith.constant 0 : i32
    return %c0_i32, %c0_i32_0 : i32, i32
  }
  func.func @transform_4(%arg0: i32) -> (i32, i32) {
    %c0_i32 = arith.constant 0 : i32
    %c0_i32_0 = arith.constant 0 : i32
    %c0_i32_1 = arith.constant 0 : i32
    return %c0_i32, %c0_i32_0 : i32, i32
  }
  func.func @transform_5(%arg0: i32) -> (i32, i32) {
    %c0_i32 = arith.constant 0 : i32
    %c0_i32_0 = arith.constant 0 : i32
    %c0_i32_1 = arith.constant 0 : i32
    return %c0_i32, %c0_i32_0 : i32, i32
  }
  func.func @transform_6(%arg0: i32) -> (i32, i32, i32) {
    %c0_i32 = arith.constant 0 : i32
    %c0_i32_0 = arith.constant 0 : i32
    %c0_i32_1 = arith.constant 0 : i32
    %c0_i32_2 = arith.constant 0 : i32
    return %c0_i32, %c0_i32_0, %c0_i32_1 : i32, i32, i32
  }
  func.func @transform_7(%arg0: i32) -> (i32, i32) {
    %c0_i32 = arith.constant 0 : i32
    %c0_i32_0 = arith.constant 0 : i32
    %c0_i32_1 = arith.constant 0 : i32
    return %c0_i32, %c0_i32_0 : i32, i32
  }
  func.func @transform_8(%arg0: i32) -> (i32, i32) {
    %c0_i32 = arith.constant 0 : i32
    %c0_i32_0 = arith.constant 0 : i32
    %c0_i32_1 = arith.constant 0 : i32
    return %c0_i32, %c0_i32_0 : i32, i32
  }
  func.func @transform_9(%arg0: i32) -> (i32, i32) {
    %c0_i32 = arith.constant 0 : i32
    %c0_i32_0 = arith.constant 0 : i32
    return %arg0, %c0_i32 : i32, i32
  }
}

module attributes {stable_mosaic.version = 11 : i64} {
  func.func @agt_kernel(%arg0: i32, %arg1: memref<16x32xf32, #tpu.memory_space<vmem>>, %arg2: memref<16x32xf32, #tpu.memory_space<vmem>>, %arg3: memref<32x32xf32, #tpu.memory_space<vmem>>, %arg4: memref<32x32xf32, #tpu.memory_space<vmem>>, %arg5: memref<4x32xf32, #tpu.memory_space<vmem>>, %arg6: memref<16x32xf32, #tpu.memory_space<vmem>>) attributes {dimension_semantics = [#tpu.dimension_semantics<parallel>], iteration_bounds = array<i64: 1>, scalar_prefetch = 0 : i64, scratch_operands = 0 : i64, tpu.core_type = #tpu.core_type<tc>, window_params = [{transform_indices = @transform_0, window_bounds = array<i64: 16, 32>}, {transform_indices = @transform_1, window_bounds = array<i64: 16, 32>}, {pipeline_mode = #tpu.pipeline_mode<synchronous>, transform_indices = @transform_2, window_bounds = array<i64: 32, 32>}, {pipeline_mode = #tpu.pipeline_mode<synchronous>, transform_indices = @transform_3, window_bounds = array<i64: 32, 32>}, {pipeline_mode = #tpu.pipeline_mode<synchronous>, transform_indices = @transform_4, window_bounds = array<i64: 4, 32>}, {transform_indices = @transform_5, window_bounds = array<i64: 16, 32>}]} {
    %c0 = arith.constant 0 : index
    %c0_0 = arith.constant 0 : index
    %0 = vector.load %arg5[%c0, %c0_0] : memref<4x32xf32, #tpu.memory_space<vmem>>, vector<4x32xf32>
    %1 = vector.extract_strided_slice %0 {offsets = [0, 0], sizes = [1, 32], strides = [1, 1]} : vector<4x32xf32> to vector<1x32xf32>
    %2 = vector.extract_strided_slice %0 {offsets = [1, 0], sizes = [1, 32], strides = [1, 1]} : vector<4x32xf32> to vector<1x32xf32>
    %3 = vector.extract_strided_slice %0 {offsets = [2, 0], sizes = [1, 32], strides = [1, 1]} : vector<4x32xf32> to vector<1x32xf32>
    %4 = vector.extract_strided_slice %0 {offsets = [3, 0], sizes = [1, 32], strides = [1, 1]} : vector<4x32xf32> to vector<1x32xf32>
    %c0_1 = arith.constant 0 : index
    %c0_2 = arith.constant 0 : index
    %5 = vector.load %arg1[%c0_1, %c0_2] : memref<16x32xf32, #tpu.memory_space<vmem>>, vector<16x32xf32>
    %c0_3 = arith.constant 0 : index
    %c0_4 = arith.constant 0 : index
    %6 = vector.load %arg3[%c0_3, %c0_4] : memref<32x32xf32, #tpu.memory_space<vmem>>, vector<32x32xf32>
    %cst = arith.constant dense<0.000000e+00> : vector<16x32xf32>
    %7 = tpu.matmul %5, %6, %cst {dimension_numbers = #tpu.dot_dimension_numbers<[1], [0], [0], [1], [0, 0, 1, 1], [], []>} : vector<16x32xf32>, vector<32x32xf32>, vector<16x32xf32> -> vector<16x32xf32>
    %c0_5 = arith.constant 0 : index
    %c0_6 = arith.constant 0 : index
    %8 = vector.load %arg2[%c0_5, %c0_6] : memref<16x32xf32, #tpu.memory_space<vmem>>, vector<16x32xf32>
    %9 = arith.addf %7, %8 : vector<16x32xf32>
    %cst_7 = arith.constant dense<0.000000e+00> : vector<16xf32>
    %10 = vector.multi_reduction <add>, %9, %cst_7 [1] : vector<16x32xf32> to vector<16xf32>
    %11 = vector.shape_cast %10 : vector<16xf32> to vector<16x1xf32>
    %cst_8 = arith.constant 3.200000e+01 : f32
    %12 = vector.broadcast %cst_8 : f32 to vector<16x1xf32>
    %13 = arith.divf %11, %12 : vector<16x1xf32>
    %14 = vector.broadcast %13 : vector<16x1xf32> to vector<16x32xf32>
    %15 = arith.subf %9, %14 : vector<16x32xf32>
    %16 = arith.mulf %15, %15 : vector<16x32xf32>
    %cst_9 = arith.constant dense<0.000000e+00> : vector<16xf32>
    %17 = vector.multi_reduction <add>, %16, %cst_9 [1] : vector<16x32xf32> to vector<16xf32>
    %18 = vector.shape_cast %17 : vector<16xf32> to vector<16x1xf32>
    %cst_10 = arith.constant 3.200000e+01 : f32
    %19 = vector.broadcast %cst_10 : f32 to vector<16x1xf32>
    %20 = arith.divf %18, %19 : vector<16x1xf32>
    %21 = vector.broadcast %13 : vector<16x1xf32> to vector<16x32xf32>
    %22 = arith.subf %9, %21 : vector<16x32xf32>
    %cst_11 = arith.constant 9.99999974E-6 : f32
    %23 = vector.broadcast %cst_11 : f32 to vector<16x1xf32>
    %24 = arith.addf %20, %23 : vector<16x1xf32>
    %25 = math.rsqrt %24 : vector<16x1xf32>
    %26 = vector.broadcast %25 : vector<16x1xf32> to vector<16x32xf32>
    %27 = arith.mulf %22, %26 : vector<16x32xf32>
    %28 = vector.broadcast %1 : vector<1x32xf32> to vector<16x32xf32>
    %29 = arith.mulf %27, %28 : vector<16x32xf32>
    %30 = vector.broadcast %2 : vector<1x32xf32> to vector<16x32xf32>
    %31 = arith.addf %29, %30 : vector<16x32xf32>
    %cst_12 = arith.constant 0.000000e+00 : f32
    %32 = vector.broadcast %cst_12 : f32 to vector<16x32xf32>
    %33 = arith.maximumf %31, %32 : vector<16x32xf32>
    %c0_13 = arith.constant 0 : index
    %c0_14 = arith.constant 0 : index
    %34 = vector.load %arg4[%c0_13, %c0_14] : memref<32x32xf32, #tpu.memory_space<vmem>>, vector<32x32xf32>
    %cst_15 = arith.constant dense<0.000000e+00> : vector<16x32xf32>
    %35 = tpu.matmul %33, %34, %cst_15 {dimension_numbers = #tpu.dot_dimension_numbers<[1], [0], [0], [1], [0, 0, 1, 1], [], []>} : vector<16x32xf32>, vector<32x32xf32>, vector<16x32xf32> -> vector<16x32xf32>
    %cst_16 = arith.constant dense<0.000000e+00> : vector<16xf32>
    %36 = vector.multi_reduction <add>, %35, %cst_16 [1] : vector<16x32xf32> to vector<16xf32>
    %37 = vector.shape_cast %36 : vector<16xf32> to vector<16x1xf32>
    %cst_17 = arith.constant 3.200000e+01 : f32
    %38 = vector.broadcast %cst_17 : f32 to vector<16x1xf32>
    %39 = arith.divf %37, %38 : vector<16x1xf32>
    %40 = vector.broadcast %39 : vector<16x1xf32> to vector<16x32xf32>
    %41 = arith.subf %35, %40 : vector<16x32xf32>
    %42 = arith.mulf %41, %41 : vector<16x32xf32>
    %cst_18 = arith.constant dense<0.000000e+00> : vector<16xf32>
    %43 = vector.multi_reduction <add>, %42, %cst_18 [1] : vector<16x32xf32> to vector<16xf32>
    %44 = vector.shape_cast %43 : vector<16xf32> to vector<16x1xf32>
    %cst_19 = arith.constant 3.200000e+01 : f32
    %45 = vector.broadcast %cst_19 : f32 to vector<16x1xf32>
    %46 = arith.divf %44, %45 : vector<16x1xf32>
    %47 = vector.broadcast %39 : vector<16x1xf32> to vector<16x32xf32>
    %48 = arith.subf %35, %47 : vector<16x32xf32>
    %cst_20 = arith.constant 9.99999974E-6 : f32
    %49 = vector.broadcast %cst_20 : f32 to vector<16x1xf32>
    %50 = arith.addf %46, %49 : vector<16x1xf32>
    %51 = math.rsqrt %50 : vector<16x1xf32>
    %52 = vector.broadcast %51 : vector<16x1xf32> to vector<16x32xf32>
    %53 = arith.mulf %48, %52 : vector<16x32xf32>
    %54 = vector.broadcast %3 : vector<1x32xf32> to vector<16x32xf32>
    %55 = arith.mulf %53, %54 : vector<16x32xf32>
    %56 = vector.broadcast %4 : vector<1x32xf32> to vector<16x32xf32>
    %57 = arith.addf %55, %56 : vector<16x32xf32>
    %58 = arith.addf %57, %5 : vector<16x32xf32>
    %cst_21 = arith.constant 0.000000e+00 : f32
    %59 = vector.broadcast %cst_21 : f32 to vector<16x32xf32>
    %60 = arith.maximumf %58, %59 : vector<16x32xf32>
    %c0_22 = arith.constant 0 : index
    %c0_23 = arith.constant 0 : index
    %61 = vector.load %arg6[%c0_22, %c0_23] : memref<16x32xf32, #tpu.memory_space<vmem>>, vector<16x32xf32>
    tpu.vector_store %arg6[%c0_22, %c0_23], %60 {strides = array<i32>} : memref<16x32xf32, #tpu.memory_space<vmem>>, vector<16x32xf32>,
    return
  }
  func.func @transform_0(%arg0: i32) -> (i32, i32) {
    %c0_i32 = arith.constant 0 : i32
    %c0_i32_0 = arith.constant 0 : i32
    return %arg0, %c0_i32 : i32, i32
  }
  func.func @transform_1(%arg0: i32) -> (i32, i32) {
    %c0_i32 = arith.constant 0 : i32
    %c0_i32_0 = arith.constant 0 : i32
    return %arg0, %c0_i32 : i32, i32
  }
  func.func @transform_2(%arg0: i32) -> (i32, i32) {
    %c0_i32 = arith.constant 0 : i32
    %c0_i32_0 = arith.constant 0 : i32
    %c0_i32_1 = arith.constant 0 : i32
    return %c0_i32, %c0_i32_0 : i32, i32
  }
  func.func @transform_3(%arg0: i32) -> (i32, i32) {
    %c0_i32 = arith.constant 0 : i32
    %c0_i32_0 = arith.constant 0 : i32
    %c0_i32_1 = arith.constant 0 : i32
    return %c0_i32, %c0_i32_0 : i32, i32
  }
  func.func @transform_4(%arg0: i32) -> (i32, i32) {
    %c0_i32 = arith.constant 0 : i32
    %c0_i32_0 = arith.constant 0 : i32
    %c0_i32_1 = arith.constant 0 : i32
    return %c0_i32, %c0_i32_0 : i32, i32
  }
  func.func @transform_5(%arg0: i32) -> (i32, i32) {
    %c0_i32 = arith.constant 0 : i32
    %c0_i32_0 = arith.constant 0 : i32
    return %arg0, %c0_i32 : i32, i32
  }
}

</mosaic_0001>

<llo_original>
// kernel: sub.1
$region0: #{sub.1}
  #allocation0 [shape = 's32[1]{0}', space=sflag, size = 0x4, scoped, tag = 'scoped memory for sub.1']
  %s0 = inlined_call_operand.vmem [shape: f32[59,2], index: 0, kind: input, shape index: {}]
  %s1 = inlined_call_operand.vmem [shape: f32[59,2], index: 1, kind: input, shape index: {}]
  %s2 = inlined_call_operand.vmem [shape: f32[59,2], index: 2, kind: output, shape index: {}]
  %v3 = vld [vmem:[%s0] sm:$0xff]
  %v4 = vld [vmem:[%s1] sm:$0xff]
  %5 = xla_tuple %v3, %v4
  %6 = xla_tuple %5
  %v7 = vsub.f32 %v3, %v4
  %8 = xla_tuple %v7
  %9 = vst [vmem:[%s2] sm:$0xff] %v7
  %s10 = scalar_lea.vmem %s0, 8
  %v11 = vld [vmem:[%s10] sm:$0xff]
  %s12 = scalar_lea.vmem %s1, 8
  %v13 = vld [vmem:[%s12] sm:$0xff]
  %14 = xla_tuple %v11, %v13
  %15 = xla_tuple %14
  %v16 = vsub.f32 %v11, %v13
  %17 = xla_tuple %v16
  %s18 = scalar_lea.vmem %s2, 8
  %19 = vst [vmem:[%s18] sm:$0xff] %v16
  %s20 = scalar_lea.vmem %s0, 16
  %v21 = vld [vmem:[%s20] sm:$0xff]
  %s22 = scalar_lea.vmem %s1, 16
  %v23 = vld [vmem:[%s22] sm:$0xff]
  %24 = xla_tuple %v21, %v23
  %25 = xla_tuple %24
  %v26 = vsub.f32 %v21, %v23
  %27 = xla_tuple %v26
  %s28 = scalar_lea.vmem %s2, 16
  %29 = vst [vmem:[%s28] sm:$0xff] %v26
  %s30 = scalar_lea.vmem %s0, 24
  %v31 = vld [vmem:[%s30] sm:$0xff]
  %s32 = scalar_lea.vmem %s1, 24
  %v33 = vld [vmem:[%s32] sm:$0xff]
  %34 = xla_tuple %v31, %v33
  %35 = xla_tuple %34
  %v36 = vsub.f32 %v31, %v33
  %37 = xla_tuple %v36
  %s38 = scalar_lea.vmem %s2, 24
  %39 = vst [vmem:[%s38] sm:$0xff] %v36
  %s40 = scalar_lea.vmem %s0, 32
  %v41 = vld [vmem:[%s40] sm:$0xff]
  %s42 = scalar_lea.vmem %s1, 32
  %v43 = vld [vmem:[%s42] sm:$0xff]
  %44 = xla_tuple %v41, %v43
  %45 = xla_tuple %44
  %v46 = vsub.f32 %v41, %v43
  %47 = xla_tuple %v46
  %s48 = scalar_lea.vmem %s2, 32
  %49 = vst [vmem:[%s48] sm:$0xff] %v46
  %s50 = scalar_lea.vmem %s0, 40
  %v51 = vld [vmem:[%s50] sm:$0xff]
  %s52 = scalar_lea.vmem %s1, 40
  %v53 = vld [vmem:[%s52] sm:$0xff]
  %54 = xla_tuple %v51, %v53
  %55 = xla_tuple %54
  %v56 = vsub.f32 %v51, %v53
  %57 = xla_tuple %v56
  %s58 = scalar_lea.vmem %s2, 40
  %59 = vst [vmem:[%s58] sm:$0xff] %v56
  %s60 = scalar_lea.vmem %s0, 48
  %v61 = vld [vmem:[%s60] sm:$0xff]
  %s62 = scalar_lea.vmem %s1, 48
  %v63 = vld [vmem:[%s62] sm:$0xff]
  %64 = xla_tuple %v61, %v63
  %65 = xla_tuple %64
  %v66 = vsub.f32 %v61, %v63
  %67 = xla_tuple %v66
  %s68 = scalar_lea.vmem %s2, 48
  %69 = vst [vmem:[%s68] sm:$0xff] %v66
  %s70 = scalar_lea.vmem %s0, 56
  %v71 = vld [vmem:[%s70] sm:$0xff]
  %s72 = scalar_lea.vmem %s1, 56
  %v73 = vld [vmem:[%s72] sm:$0xff]
  %74 = xla_tuple %v71, %v73
  %75 = xla_tuple %74
  %v76 = vsub.f32 %v71, %v73
  %77 = xla_tuple %v76
  %s78 = scalar_lea.vmem %s2, 56
  %79 = vst [vmem:[%s78] sm:$0xff] %v76

// kernel: att_forward.3
$region0: #{att_forward.3}
  #allocation0 [shape = 'u32[]', space=smem, size = 0x4, offset = 0x4, fixed_abs, tag = 'smem constant byte address 0x4 - core index']
  #allocation1 [shape = 'u32[144,128]{1,0:T(1,128)}', space=vmem, size = 0x12000, scoped, tag = 'internal scratch']
  %s0 = inlined_call_operand.vmem [shape: f32[16,32], index: 0, kind: input, shape index: {}]
  %s1 = inlined_call_operand.vmem [shape: f32[16,32], index: 1, kind: input, shape index: {}]
  %s2 = inlined_call_operand.vmem [shape: f32[32,32], index: 2, kind: input, shape index: {}]
  %s3 = inlined_call_operand.vmem [shape: f32[32,32], index: 3, kind: input, shape index: {}]
  %s4 = inlined_call_operand.vmem [shape: f32[4,32], index: 4, kind: input, shape index: {}]
  %s5 = inlined_call_operand.hbm [shape: f32[16,32], index: 5, kind: output, shape index: {}]
  %s6 = sld [smem:[#allocation0]]
  $region30: #{att_forward.3} parent=0
    _
  %s8 = ssub.s32 1, %s6
  %s9 = scalar_select 0, %s8, %s6
  $region1: #{att_forward.3} parent=0
    #allocation2 [shape = 'u8[8192]{0}', space=vmem, size = 0x2000, scoped, tag = 'output window, operand 0, single buffered']
    #allocation3 [shape = 's32[1]{0}', space=sflag, size = 0x4, scoped, tag = 'scoped memory for att_forward.3']
    %10 = vsyncpa [#allocation3], 0
    // Predicated region
    $region2: #{att_forward.3} parent=1 // pred_check
      _
    $region3: #{att_forward.3} parent=1 // pred_check_branch
      %12 = sbr.rel (0) target = $region5
    $region4: #{att_forward.3} parent=1 // pred_region
      _
    $region5: #{att_forward.3} parent=1 // pred_fallthru
      _
    // Predicated region
    $region6: #{att_forward.3} parent=1 // pred_check
      _
    $region7: #{att_forward.3} parent=1 // pred_check_branch
      %14 = sbr.rel (0) target = $region9
    $region8: #{att_forward.3} parent=1 // pred_region
      _
    $region9: #{att_forward.3} parent=1 // pred_fallthru
      _
    // Predicated region
    $region10: #{att_forward.3} parent=1 // pred_check
      _
    $region11: #{att_forward.3} parent=1 // pred_check_branch
      %16 = sbr.rel (0) target = $region13
    $region12: #{att_forward.3} parent=1 // pred_region
      _
    $region13: #{att_forward.3} parent=1 // pred_fallthru
      _
    // Predicated region
    $region14: #{att_forward.3} parent=1 // pred_check
      _
    $region15: #{att_forward.3} parent=1 // pred_check_branch
      %18 = sbr.rel (0) target = $region17
    $region16: #{att_forward.3} parent=1 // pred_region
      _
    $region17: #{att_forward.3} parent=1 // pred_fallthru
      _
    // Predicated region
    $region18: #{att_forward.3} parent=1 // pred_check
      _
    $region19: #{att_forward.3} parent=1 // pred_check_branch
      %20 = sbr.rel (0) target = $region21
    $region20: #{att_forward.3} parent=1 // pred_region
      _
    $region21: #{att_forward.3} parent=1 // pred_fallthru
      _
    %v21 = vld [vmem:[%s4] sm:$0xf]
    %v22 = vld [vmem:[%s0] sm:$0xff]
    %v23 = vld [vmem:[%s0 + $0x8] sm:$0xff]
    %v24 = vld [vmem:[%s2] sm:$0xff]
    %v25 = vld [vmem:[%s2 + $0x8] sm:$0xff]
    %v26 = vld [vmem:[%s2 + $0x10] sm:$0xff]
    %v27 = vld [vmem:[%s2 + $0x18] sm:$0xff]
    %v28 = vld [vmem:[%s1] sm:$0xff]
    %v29 = vld [vmem:[%s1 + $0x8] sm:$0xff]
    %vm30 = vcmask 261120
    %v32 = vsel %vm30, %v22, 0
    %v35 = vsel %vm30, %v23, 0
    %37 = vmatprep.subr.mxu0 0.0
    %38 = vmatpush1.msra.mxu0 %v24
    %39 = vmatprep.subr.mxu0 0.0
    %40 = vmatpush1.msra.mxu0 %v25
    %41 = vmatprep.subr.mxu0 0.0
    %42 = vmatpush1.msra.mxu0 %v26
    %43 = vmatprep.subr.mxu0 0.0
    %44 = vmatpush1.msra.mxu0 %v27
    %45 = vmatprep.subr.mxu0 0.0
    %46 = vmatpush1.msra.mxu0 0.0
    %47 = vmatprep.subr.mxu0 0.0
    %48 = vmatpush1.msra.mxu0 0.0
    %49 = vmatprep.subr.mxu0 0.0
    %50 = vmatpush1.msra.mxu0 0.0
    %51 = vmatprep.subr.mxu0 0.0
    %52 = vmatpush1.msra.mxu0 0.0
    %53 = vmatprep.subr.mxu0 0.0
    %54 = vmatpush1.msra.mxu0 0.0
    %55 = vmatprep.subr.mxu0 0.0
    %56 = vmatpush1.msra.mxu0 0.0
    %57 = vmatprep.subr.mxu0 0.0
    %58 = vmatpush1.msra.mxu0 0.0
    %59 = vmatprep.subr.mxu0 0.0
    %60 = vmatpush1.msra.mxu0 0.0
    %61 = vmatprep.subr.mxu0 0.0
    %62 = vmatpush1.msra.mxu0 0.0
    %63 = vmatprep.subr.mxu0 0.0
    %64 = vmatpush1.msra.mxu0 0.0
    %65 = vmatprep.subr.mxu0 0.0
    %66 = vmatpush1.msra.mxu0 0.0
    %67 = vmatprep.subr.mxu0 0.0
    %68 = vmatpush1.msra.mxu0 0.0
    %69 = vmatprep.subr.mxu0 0.0
    %70 = vmatpush1.msra.mxu0 0.0
    %71 = vmatprep.subr.mxu0 0.0
    %72 = vmatpush1.msra.mxu0 0.0
    %73 = vmatprep.subr.mxu0 0.0
    %74 = vmatpush1.msra.mxu0 0.0
    %75 = vmatprep.subr.mxu0 0.0
    %76 = vmatpush1.msra.mxu0 0.0
    %77 = vmatprep.subr.mxu0 0.0
    %78 = vmatpush1.msra.mxu0 0.0
    %79 = vmatprep.subr.mxu0 0.0
    %80 = vmatpush1.msra.mxu0 0.0
    %81 = vmatprep.subr.mxu0 0.0
    %82 = vmatpush1.msra.mxu0 0.0
    %83 = vmatprep.subr.mxu0 0.0
    %84 = vmatpush1.msra.mxu0 0.0
    %85 = vmatprep.subr.mxu0 0.0
    %86 = vmatpush1.msra.mxu0 0.0
    %87 = vmatprep.subr.mxu0 0.0
    %88 = vmatpush1.msra.mxu0 0.0
    %89 = vmatprep.subr.mxu0 0.0
    %90 = vmatpush1.msra.mxu0 0.0
    %91 = vmatprep.subr.mxu0 0.0
    %92 = vmatpush1.msra.mxu0 0.0
    %93 = vmatprep.subr.mxu0 0.0
    %94 = vmatpush1.msra.mxu0 0.0
    %95 = vmatprep.subr.mxu0 0.0
    %96 = vmatpush1.msra.mxu0 0.0
    %97 = vmatprep.subr.mxu0 0.0
    %98 = vmatpush1.msra.mxu0 0.0
    %99 = vmatprep.subr.mxu0 0.0
    %100 = vmatpush1.msra.mxu0 0.0
    %101 = vmatprep.mubr.f32.mxu0 0.0
    %102 = vmatmul.mubr.f32.gmra.mrb[0].mxu0 %v32
    %v103 = vpop.f32.mrb[0].mxu0
    %v104 = vadd.f32 %v28, %v103
    %v105 = vpop.f32.mrb[0].mxu0
    %106 = vmatprep.mubr.f32.mxu0 0.0
    %107 = vmatmul.mubr.f32.gmra.mrb[0].mxu0 %v35
    %v108 = vpop.f32.mrb[0].mxu0
    %v109 = vadd.f32 %v29, %v108
    %v110 = vpop.f32.mrb[0].mxu0
    %111 = vdwg.mxu0
    %v112 = vsel %vm30, %v104, 0.0
    %113 = vadd.xlane.f32.xlu0 %v112
    %v114 = vpop.xlane.xlu0 %113
    %v115 = vsel %vm30, %v109, 0.0
    %116 = vadd.xlane.f32.xlu0 %v115
    %v117 = vpop.xlane.xlu0 %116
    %v118 = vrcp.pop 32.0
    %v119 = vmul.f32 %v114, %v118
    %v120 = vmul.f32 %v117, %v118
    %v121 = vsub.f32 %v104, %v119
    %v122 = vsub.f32 %v109, %v120
    %v123 = vmul.f32 %v121, %v121
    %v124 = vmul.f32 %v122, %v122
    %v125 = vsel %vm30, %v123, 0.0
    %126 = vadd.xlane.f32.xlu0 %v125
    %v127 = vpop.xlane.xlu0 %126
    %v128 = vsel %vm30, %v124, 0.0
    %129 = vadd.xlane.f32.xlu0 %v128
    %v130 = vpop.xlane.xlu0 %129
    %v131 = vmul.f32 %v127, %v118
    %v132 = vmul.f32 %v130, %v118
    %v133 = vadd.f32 %v131, 1e-05
    %v134 = vadd.f32 %v132, 1e-05
    %v135 = vrsqrt.pop %v133
    %v136 = vrsqrt.pop %v134
    %v137 = vmul.f32 %v121, %v135
    %v138 = vmul.f32 %v122, %v136
    %v139 = vlaneseq
    %v140 = vshrl.u32 %v139, 7
    %v141 = vsub.s32 0, %v140
    %v142 = vrot.slane %v21, %v141
    %v143 = vmul.f32 %v137, %v142
    %v144 = vmul.f32 %v138, %v142
    %v145 = vlaneseq
    %v146 = vshrl.u32 %v145, 7
    %v147 = vsub.s32 1, %v146
    %v148 = vrot.slane %v21, %v147
    %v149 = vadd.f32 %v143, %v148
    %v150 = vadd.f32 %v144, %v148
    %v151 = vmax.f32 %v149, 0.0
    %v152 = vmax.f32 %v150, 0.0
    %v153 = vld [vmem:[%s3] sm:$0xff]
    %v154 = vld [vmem:[%s3 + $0x8] sm:$0xff]
    %v155 = vld [vmem:[%s3 + $0x10] sm:$0xff]
    %v156 = vld [vmem:[%s3 + $0x18] sm:$0xff]
    %v158 = vsel %vm30, %v151, 0
    %v161 = vsel %vm30, %v152, 0
    %163 = vmatprep.subr.mxu0 0.0
    %164 = vmatpush1.msra.mxu0 %v153
    %165 = vmatprep.subr.mxu0 0.0
    %166 = vmatpush1.msra.mxu0 %v154
    %167 = vmatprep.subr.mxu0 0.0
    %168 = vmatpush1.msra.mxu0 %v155
    %169 = vmatprep.subr.mxu0 0.0
    %170 = vmatpush1.msra.mxu0 %v156
    %171 = vmatprep.subr.mxu0 0.0
    %172 = vmatpush1.msra.mxu0 0.0
    %173 = vmatprep.subr.mxu0 0.0
    %174 = vmatpush1.msra.mxu0 0.0
    %175 = vmatprep.subr.mxu0 0.0
    %176 = vmatpush1.msra.mxu0 0.0
    %177 = vmatprep.subr.mxu0 0.0
    %178 = vmatpush1.msra.mxu0 0.0
    %179 = vmatprep.subr.mxu0 0.0
    %180 = vmatpush1.msra.mxu0 0.0
    %181 = vmatprep.subr.mxu0 0.0
    %182 = vmatpush1.msra.mxu0 0.0
    %183 = vmatprep.subr.mxu0 0.0
    %184 = vmatpush1.msra.mxu0 0.0
    %185 = vmatprep.subr.mxu0 0.0
    %186 = vmatpush1.msra.mxu0 0.0
    %187 = vmatprep.subr.mxu0 0.0
    %188 = vmatpush1.msra.mxu0 0.0
    %189 = vmatprep.subr.mxu0 0.0
    %190 = vmatpush1.msra.mxu0 0.0
    %191 = vmatprep.subr.mxu0 0.0
    %192 = vmatpush1.msra.mxu0 0.0
    %193 = vmatprep.subr.mxu0 0.0
    %194 = vmatpush1.msra.mxu0 0.0
    %195 = vmatprep.subr.mxu0 0.0
    %196 = vmatpush1.msra.mxu0 0.0
    %197 = vmatprep.subr.mxu0 0.0
    %198 = vmatpush1.msra.mxu0 0.0
    %199 = vmatprep.subr.mxu0 0.0
    %200 = vmatpush1.msra.mxu0 0.0
    %201 = vmatprep.subr.mxu0 0.0
    %202 = vmatpush1.msra.mxu0 0.0
    %203 = vmatprep.subr.mxu0 0.0
    %204 = vmatpush1.msra.mxu0 0.0
    %205 = vmatprep.subr.mxu0 0.0
    %206 = vmatpush1.msra.mxu0 0.0
    %207 = vmatprep.subr.mxu0 0.0
    %208 = vmatpush1.msra.mxu0 0.0
    %209 = vmatprep.subr.mxu0 0.0
    %210 = vmatpush1.msra.mxu0 0.0
    %211 = vmatprep.subr.mxu0 0.0
    %212 = vmatpush1.msra.mxu0 0.0
    %213 = vmatprep.subr.mxu0 0.0
    %214 = vmatpush1.msra.mxu0 0.0
    %215 = vmatprep.subr.mxu0 0.0
    %216 = vmatpush1.msra.mxu0 0.0
    %217 = vmatprep.subr.mxu0 0.0
    %218 = vmatpush1.msra.mxu0 0.0
    %219 = vmatprep.subr.mxu0 0.0
    %220 = vmatpush1.msra.mxu0 0.0
    %221 = vmatprep.subr.mxu0 0.0
    %222 = vmatpush1.msra.mxu0 0.0
    %223 = vmatprep.subr.mxu0 0.0
    %224 = vmatpush1.msra.mxu0 0.0
    %225 = vmatprep.subr.mxu0 0.0
    %226 = vmatpush1.msra.mxu0 0.0
    %227 = vmatprep.mubr.f32.mxu0 0.0
    %228 = vmatmul.mubr.f32.gmra.mrb[0].mxu0 %v158
    %v229 = vpop.f32.mrb[0].mxu0
    %v230 = vadd.f32 0.0, %v229
    %v231 = vpop.f32.mrb[0].mxu0
    %232 = vmatprep.mubr.f32.mxu0 0.0
    %233 = vmatmul.mubr.f32.gmra.mrb[0].mxu0 %v161
    %v234 = vpop.f32.mrb[0].mxu0
    %v235 = vadd.f32 0.0, %v234
    %v236 = vpop.f32.mrb[0].mxu0
    %237 = vdwg.mxu0
    %v238 = vsel %vm30, %v230, 0.0
    %239 = vadd.xlane.f32.xlu0 %v238
    %v240 = vpop.xlane.xlu0 %239
    %v241 = vsel %vm30, %v235, 0.0
    %242 = vadd.xlane.f32.xlu0 %v241
    %v243 = vpop.xlane.xlu0 %242
    %v244 = vmul.f32 %v240, %v118
    %v245 = vmul.f32 %v243, %v118
    %v246 = vsub.f32 %v230, %v244
    %v247 = vsub.f32 %v235, %v245
    %v248 = vmul.f32 %v246, %v246
    %v249 = vmul.f32 %v247, %v247
    %v250 = vsel %vm30, %v248, 0.0
    %251 = vadd.xlane.f32.xlu0 %v250
    %v252 = vpop.xlane.xlu0 %251
    %v253 = vsel %vm30, %v249, 0.0
    %254 = vadd.xlane.f32.xlu0 %v253
    %v255 = vpop.xlane.xlu0 %254
    %v256 = vmul.f32 %v252, %v118
    %v257 = vmul.f32 %v255, %v118
    %v258 = vadd.f32 %v256, 1e-05
    %v259 = vadd.f32 %v257, 1e-05
    %v260 = vrsqrt.pop %v258
    %v261 = vrsqrt.pop %v259
    %v262 = vmul.f32 %v246, %v260
    %v263 = vmul.f32 %v247, %v261
    %v264 = vlaneseq
    %v265 = vshrl.u32 %v264, 7
    %v266 = vsub.s32 2, %v265
    %v267 = vrot.slane %v21, %v266
    %v268 = vmul.f32 %v262, %v267
    %v269 = vmul.f32 %v263, %v267
    %v270 = vlaneseq
    %v271 = vshrl.u32 %v270, 7
    %v272 = vsub.s32 3, %v271
    %v273 = vrot.slane %v21, %v272
    %v274 = vadd.f32 %v268, %v273
    %v275 = vadd.f32 %v269, %v273
    %v276 = vadd.f32 %v274, %v22
    %v277 = vadd.f32 %v275, %v23
    %v278 = vmax.f32 %v276, 0.0
    %v279 = vmax.f32 %v277, 0.0
    %280 = vst.msk [vmem:[#allocation2] sm:$0xff] %vm30, %v278
    %281 = vst.msk [vmem:[#allocation2 + $0x8] sm:$0xff] %vm30, %v279
    // Predicated region
    $region22: #{att_forward.3} parent=1 // pred_check
      _
    $region23: #{att_forward.3} parent=1 // pred_check_branch
      %283 = sbr.rel (0) target = $region25
    $region24: #{att_forward.3} parent=1 // pred_region
      %s285 = ssub.s32 256, 256
      %286 = vsyncadd [#allocation3], %s285
      %s287 = sshll.u32 [#allocation2], 4
      %s288 = int_to_ptr.vmem [resolvable:$true] %s287
      %293 = dma.vmem_to_hbm [thread:$0]  %s288, 256, %s5, [#allocation3], 128, 128, 8
    $region25: #{att_forward.3} parent=1 // pred_fallthru
      _
    // Predicated region
    $region26: #{att_forward.3} parent=1 // pred_check
      _
    $region27: #{att_forward.3} parent=1 // pred_check_branch
      %295 = sbr.rel (0) target = $region29
    $region28: #{att_forward.3} parent=1 // pred_region
      %296 = dma.done [#allocation3], 256
    $region29: #{att_forward.3} parent=1 // pred_fallthru
      _
    %297 = vsyncpa [#allocation3], 1

// kernel: att_forward.2
$region0: #{att_forward.2}
  #allocation0 [shape = 'u32[]', space=smem, size = 0x4, offset = 0x4, fixed_abs, tag = 'smem constant byte address 0x4 - core index']
  #allocation1 [shape = 'u32[144,128]{1,0:T(1,128)}', space=vmem, size = 0x12000, scoped, tag = 'internal scratch']
  %s0 = inlined_call_operand.vmem [shape: f32[64,2], index: 0, kind: input, shape index: {}]
  %s1 = inlined_call_operand.vmem [shape: f32[64,32], index: 1, kind: input, shape index: {}]
  %s2 = inlined_call_operand.vmem [shape: f32[64,16], index: 2, kind: input, shape index: {}]
  %s3 = inlined_call_operand.vmem [shape: f32[7,16], index: 3, kind: input, shape index: {}]
  %s4 = inlined_call_operand.vmem [shape: f32[16,16], index: 4, kind: input, shape index: {}]
  %s5 = inlined_call_operand.vmem [shape: f32[32,16], index: 5, kind: input, shape index: {}]
  %s6 = inlined_call_operand.vmem [shape: f32[3,16,32], index: 6, kind: input, shape index: {}]
  %s7 = inlined_call_operand.vmem [shape: f32[32,32], index: 7, kind: input, shape index: {}]
  %s8 = inlined_call_operand.vmem [shape: f32[2,32], index: 8, kind: input, shape index: {}]
  %s9 = inlined_call_operand.vmem [shape: f32[64,32], index: 9, kind: output, shape index: {}]
  %s10 = sld [smem:[#allocation0]]
  $region46: #{att_forward.2} parent=0
    _
  %s12 = ssub.s32 1, %s10
  %s13 = scalar_select 0, %s12, %s10
  // Predicated region
  $region2: #{att_forward.2} parent=0 // pred_check
    _
  $region3: #{att_forward.2} parent=0 // pred_check_branch
    %15 = sbr.rel (0) target = $region5
  $region4: #{att_forward.2} parent=0 // pred_region
    _
  $region5: #{att_forward.2} parent=0 // pred_fallthru
    _
  // Predicated region
  $region6: #{att_forward.2} parent=0 // pred_check
    _
  $region7: #{att_forward.2} parent=0 // pred_check_branch
    %17 = sbr.rel (0) target = $region9
  $region8: #{att_forward.2} parent=0 // pred_region
    _
  $region9: #{att_forward.2} parent=0 // pred_fallthru
    _
  // Predicated region
  $region10: #{att_forward.2} parent=0 // pred_check
    _
  $region11: #{att_forward.2} parent=0 // pred_check_branch
    %19 = sbr.rel (0) target = $region13
  $region12: #{att_forward.2} parent=0 // pred_region
    _
  $region13: #{att_forward.2} parent=0 // pred_fallthru
    _
  // Predicated region
  $region14: #{att_forward.2} parent=0 // pred_check
    _
  $region15: #{att_forward.2} parent=0 // pred_check_branch
    %21 = sbr.rel (0) target = $region17
  $region16: #{att_forward.2} parent=0 // pred_region
    _
  $region17: #{att_forward.2} parent=0 // pred_fallthru
    _
  // Predicated region
  $region18: #{att_forward.2} parent=0 // pred_check
    _
  $region19: #{att_forward.2} parent=0 // pred_check_branch
    %23 = sbr.rel (0) target = $region21
  $region20: #{att_forward.2} parent=0 // pred_region
    _
  $region21: #{att_forward.2} parent=0 // pred_fallthru
    _
  // Predicated region
  $region22: #{att_forward.2} parent=0 // pred_check
    _
  $region23: #{att_forward.2} parent=0 // pred_check_branch
    %25 = sbr.rel (0) target = $region25
  $region24: #{att_forward.2} parent=0 // pred_region
    _
  $region25: #{att_forward.2} parent=0 // pred_fallthru
    _
  // Predicated region
  $region26: #{att_forward.2} parent=0 // pred_check
    _
  $region27: #{att_forward.2} parent=0 // pred_check_branch
    %27 = sbr.rel (0) target = $region29
  $region28: #{att_forward.2} parent=0 // pred_region
    _
  $region29: #{att_forward.2} parent=0 // pred_fallthru
    _
  // Predicated region
  $region30: #{att_forward.2} parent=0 // pred_check
    _
  $region31: #{att_forward.2} parent=0 // pred_check_branch
    %29 = sbr.rel (0) target = $region33
  $region32: #{att_forward.2} parent=0 // pred_region
    _
  $region33: #{att_forward.2} parent=0 // pred_fallthru
    _
  // Predicated region
  $region34: #{att_forward.2} parent=0 // pred_check
    _
  $region35: #{att_forward.2} parent=0 // pred_check_branch
    %31 = sbr.rel (0) target = $region37
  $region36: #{att_forward.2} parent=0 // pred_region
    _
  $region37: #{att_forward.2} parent=0 // pred_fallthru
    _
  %v32 = vld [vmem:[%s3] sm:$0x7f]
  %v33 = vld [vmem:[%s8] sm:$0x3]
  %v34 = vld [vmem:[%s0] sm:$0xff]
  %v35 = vld [vmem:[%s0 + $0x8] sm:$0xff]
  %v36 = vld [vmem:[%s0 + $0x10] sm:$0xff]
  %v37 = vld [vmem:[%s0 + $0x18] sm:$0xff]
  %v38 = vld [vmem:[%s0 + $0x20] sm:$0xff]
  %v39 = vld [vmem:[%s0 + $0x28] sm:$0xff]
  %v40 = vld [vmem:[%s0 + $0x30] sm:$0xff]
  %v41 = vld [vmem:[%s0 + $0x38] sm:$0xff]
  %43 = vset.pattern.permute.xlu0 0
  %44 = vperm.xlu0 %43, %v34
  %v45 = vpop.permute.xlu0 %44
  %48 = vset.pattern.permute.xlu0 0
  %49 = vperm.xlu0 %48, %v35
  %v50 = vpop.permute.xlu0 %49
  %53 = vset.pattern.permute.xlu0 0
  %54 = vperm.xlu0 %53, %v36
  %v55 = vpop.permute.xlu0 %54
  %58 = vset.pattern.permute.xlu0 0
  %59 = vperm.xlu0 %58, %v37
  %v60 = vpop.permute.xlu0 %59
  %63 = vset.pattern.permute.xlu0 0
  %64 = vperm.xlu0 %63, %v38
  %v65 = vpop.permute.xlu0 %64
  %68 = vset.pattern.permute.xlu0 0
  %69 = vperm.xlu0 %68, %v39
  %v70 = vpop.permute.xlu0 %69
  %73 = vset.pattern.permute.xlu0 0
  %74 = vperm.xlu0 %73, %v40
  %v75 = vpop.permute.xlu0 %74
  %78 = vset.pattern.permute.xlu0 0
  %79 = vperm.xlu0 %78, %v41
  %v80 = vpop.permute.xlu0 %79
  %v82 = vlaneseq
  %v83 = vshrl.u32 %v82, 7
  %v84 = vsub.s32 0, %v83
  %v85 = vrot.slane %v32, %v84
  %v86 = vmul.f32 %v45, %v85
  %v87 = vmul.f32 %v50, %v85
  %v88 = vmul.f32 %v55, %v85
  %v89 = vmul.f32 %v60, %v85
  %v90 = vmul.f32 %v65, %v85
  %v91 = vmul.f32 %v70, %v85
  %v92 = vmul.f32 %v75, %v85
  %v93 = vmul.f32 %v80, %v85
  %94 = vset.pattern.permute.xlu0 1
  %95 = vperm.xlu0 %94, %v34
  %v96 = vpop.permute.xlu0 %95
  %98 = vset.pattern.permute.xlu0 1
  %99 = vperm.xlu0 %98, %v35
  %v100 = vpop.permute.xlu0 %99
  %102 = vset.pattern.permute.xlu0 1
  %103 = vperm.xlu0 %102, %v36
  %v104 = vpop.permute.xlu0 %103
  %106 = vset.pattern.permute.xlu0 1
  %107 = vperm.xlu0 %106, %v37
  %v108 = vpop.permute.xlu0 %107
  %110 = vset.pattern.permute.xlu0 1
  %111 = vperm.xlu0 %110, %v38
  %v112 = vpop.permute.xlu0 %111
  %114 = vset.pattern.permute.xlu0 1
  %115 = vperm.xlu0 %114, %v39
  %v116 = vpop.permute.xlu0 %115
  %118 = vset.pattern.permute.xlu0 1
  %119 = vperm.xlu0 %118, %v40
  %v120 = vpop.permute.xlu0 %119
  %122 = vset.pattern.permute.xlu0 1
  %123 = vperm.xlu0 %122, %v41
  %v124 = vpop.permute.xlu0 %123
  %v126 = vlaneseq
  %v127 = vshrl.u32 %v126, 7
  %v128 = vsub.s32 1, %v127
  %v129 = vrot.slane %v32, %v128
  %v130 = vmul.f32 %v96, %v129
  %v131 = vmul.f32 %v100, %v129
  %v132 = vmul.f32 %v104, %v129
  %v133 = vmul.f32 %v108, %v129
  %v134 = vmul.f32 %v112, %v129
  %v135 = vmul.f32 %v116, %v129
  %v136 = vmul.f32 %v120, %v129
  %v137 = vmul.f32 %v124, %v129
  %v138 = vadd.f32 %v86, %v130
  %v139 = vadd.f32 %v87, %v131
  %v140 = vadd.f32 %v88, %v132
  %v141 = vadd.f32 %v89, %v133
  %v142 = vadd.f32 %v90, %v134
  %v143 = vadd.f32 %v91, %v135
  %v144 = vadd.f32 %v92, %v136
  %v145 = vadd.f32 %v93, %v137
  %v146 = vlaneseq
  %v147 = vshrl.u32 %v146, 7
  %v148 = vsub.s32 2, %v147
  %v149 = vrot.slane %v32, %v148
  %v150 = vadd.f32 %v138, %v149
  %v151 = vadd.f32 %v139, %v149
  %v152 = vadd.f32 %v140, %v149
  %v153 = vadd.f32 %v141, %v149
  %v154 = vadd.f32 %v142, %v149
  %v155 = vadd.f32 %v143, %v149
  %v156 = vadd.f32 %v144, %v149
  %v157 = vadd.f32 %v145, %v149
  %v158 = vmax.f32 %v150, 0.0
  %v159 = vmax.f32 %v151, 0.0
  %v160 = vmax.f32 %v152, 0.0
  %v161 = vmax.f32 %v153, 0.0
  %v162 = vmax.f32 %v154, 0.0
  %v163 = vmax.f32 %v155, 0.0
  %v164 = vmax.f32 %v156, 0.0
  %v165 = vmax.f32 %v157, 0.0
  %v166 = vld [vmem:[%s4] sm:$0xff]
  %v167 = vld [vmem:[%s4 + $0x8] sm:$0xff]
  %vm168 = vcmask 130048
  %v170 = vsel %vm168, %v158, 0
  %v173 = vsel %vm168, %v159, 0
  %v176 = vsel %vm168, %v160, 0
  %v179 = vsel %vm168, %v161, 0
  %v182 = vsel %vm168, %v162, 0
  %v185 = vsel %vm168, %v163, 0
  %v188 = vsel %vm168, %v164, 0
  %v191 = vsel %vm168, %v165, 0
  %193 = vmatprep.subr.mxu0 0.0
  %194 = vmatpush1.msra.mxu0 %v166
  %195 = vmatprep.subr.mxu0 0.0
  %196 = vmatpush1.msra.mxu0 %v167
  %197 = vmatprep.subr.mxu0 0.0
  %198 = vmatpush1.msra.mxu0 0.0
  %199 = vmatprep.subr.mxu0 0.0
  %200 = vmatpush1.msra.mxu0 0.0
  %201 = vmatprep.subr.mxu0 0.0
  %202 = vmatpush1.msra.mxu0 0.0
  %203 = vmatprep.subr.mxu0 0.0
  %204 = vmatpush1.msra.mxu0 0.0
  %205 = vmatprep.subr.mxu0 0.0
  %206 = vmatpush1.msra.mxu0 0.0
  %207 = vmatprep.subr.mxu0 0.0
  %208 = vmatpush1.msra.mxu0 0.0
  %209 = vmatprep.subr.mxu0 0.0
  %210 = vmatpush1.msra.mxu0 0.0
  %211 = vmatprep.subr.mxu0 0.0
  %212 = vmatpush1.msra.mxu0 0.0
  %213 = vmatprep.subr.mxu0 0.0
  %214 = vmatpush1.msra.mxu0 0.0
  %215 = vmatprep.subr.mxu0 0.0
  %216 = vmatpush1.msra.mxu0 0.0
  %217 = vmatprep.subr.mxu0 0.0
  %218 = vmatpush1.msra.mxu0 0.0
  %219 = vmatprep.subr.mxu0 0.0
  %220 = vmatpush1.msra.mxu0 0.0
  %221 = vmatprep.subr.mxu0 0.0
  %222 = vmatpush1.msra.mxu0 0.0
  %223 = vmatprep.subr.mxu0 0.0
  %224 = vmatpush1.msra.mxu0 0.0
  %225 = vmatprep.subr.mxu0 0.0
  %226 = vmatpush1.msra.mxu0 0.0
  %227 = vmatprep.subr.mxu0 0.0
  %228 = vmatpush1.msra.mxu0 0.0
  %229 = vmatprep.subr.mxu0 0.0
  %230 = vmatpush1.msra.mxu0 0.0
  %231 = vmatprep.subr.mxu0 0.0
  %232 = vmatpush1.msra.mxu0 0.0
  %233 = vmatprep.subr.mxu0 0.0
  %234 = vmatpush1.msra.mxu0 0.0
  %235 = vmatprep.subr.mxu0 0.0
  %236 = vmatpush1.msra.mxu0 0.0
  %237 = vmatprep.subr.mxu0 0.0
  %238 = vmatpush1.msra.mxu0 0.0
  %239 = vmatprep.subr.mxu0 0.0
  %240 = vmatpush1.msra.mxu0 0.0
  %241 = vmatprep.subr.mxu0 0.0
  %242 = vmatpush1.msra.mxu0 0.0
  %243 = vmatprep.subr.mxu0 0.0
  %244 = vmatpush1.msra.mxu0 0.0
  %245 = vmatprep.subr.mxu0 0.0
  %246 = vmatpush1.msra.mxu0 0.0
  %247 = vmatprep.subr.mxu0 0.0
  %248 = vmatpush1.msra.mxu0 0.0
  %249 = vmatprep.subr.mxu0 0.0
  %250 = vmatpush1.msra.mxu0 0.0
  %251 = vmatprep.subr.mxu0 0.0
  %252 = vmatpush1.msra.mxu0 0.0
  %253 = vmatprep.subr.mxu0 0.0
  %254 = vmatpush1.msra.mxu0 0.0
  %255 = vmatprep.subr.mxu0 0.0
  %256 = vmatpush1.msra.mxu0 0.0
  %257 = vmatprep.mubr.f32.mxu0 0.0
  %258 = vmatmul.mubr.f32.gmra.mrb[0].mxu0 %v170
  %v259 = vpop.f32.mrb[0].mxu0
  %v260 = vadd.f32 0.0, %v259
  %v261 = vpop.f32.mrb[0].mxu0
  %262 = vmatprep.mubr.f32.mxu0 0.0
  %263 = vmatmul.mubr.f32.gmra.mrb[0].mxu0 %v173
  %v264 = vpop.f32.mrb[0].mxu0
  %v265 = vadd.f32 0.0, %v264
  %v266 = vpop.f32.mrb[0].mxu0
  %267 = vmatprep.mubr.f32.mxu0 0.0
  %268 = vmatmul.mubr.f32.gmra.mrb[0].mxu0 %v176
  %v269 = vpop.f32.mrb[0].mxu0
  %v270 = vadd.f32 0.0, %v269
  %v271 = vpop.f32.mrb[0].mxu0
  %272 = vmatprep.mubr.f32.mxu0 0.0
  %273 = vmatmul.mubr.f32.gmra.mrb[0].mxu0 %v179
  %v274 = vpop.f32.mrb[0].mxu0
  %v275 = vadd.f32 0.0, %v274
  %v276 = vpop.f32.mrb[0].mxu0
  %277 = vmatprep.mubr.f32.mxu0 0.0
  %278 = vmatmul.mubr.f32.gmra.mrb[0].mxu0 %v182
  %v279 = vpop.f32.mrb[0].mxu0
  %v280 = vadd.f32 0.0, %v279
  %v281 = vpop.f32.mrb[0].mxu0
  %282 = vmatprep.mubr.f32.mxu0 0.0
  %283 = vmatmul.mubr.f32.gmra.mrb[0].mxu0 %v185
  %v284 = vpop.f32.mrb[0].mxu0
  %v285 = vadd.f32 0.0, %v284
  %v286 = vpop.f32.mrb[0].mxu0
  %287 = vmatprep.mubr.f32.mxu0 0.0
  %288 = vmatmul.mubr.f32.gmra.mrb[0].mxu0 %v188
  %v289 = vpop.f32.mrb[0].mxu0
  %v290 = vadd.f32 0.0, %v289
  %v291 = vpop.f32.mrb[0].mxu0
  %292 = vmatprep.mubr.f32.mxu0 0.0
  %293 = vmatmul.mubr.f32.gmra.mrb[0].mxu0 %v191
  %v294 = vpop.f32.mrb[0].mxu0
  %v295 = vadd.f32 0.0, %v294
  %v296 = vpop.f32.mrb[0].mxu0
  %297 = vdwg.mxu0
  %v298 = vsel %vm168, %v260, 0.0
  %299 = vadd.xlane.f32.xlu0 %v298
  %v300 = vpop.xlane.xlu0 %299
  %v301 = vsel %vm168, %v265, 0.0
  %302 = vadd.xlane.f32.xlu0 %v301
  %v303 = vpop.xlane.xlu0 %302
  %v304 = vsel %vm168, %v270, 0.0
  %305 = vadd.xlane.f32.xlu0 %v304
  %v306 = vpop.xlane.xlu0 %305
  %v307 = vsel %vm168, %v275, 0.0
  %308 = vadd.xlane.f32.xlu0 %v307
  %v309 = vpop.xlane.xlu0 %308
  %v310 = vsel %vm168, %v280, 0.0
  %311 = vadd.xlane.f32.xlu0 %v310
  %v312 = vpop.xlane.xlu0 %311
  %v313 = vsel %vm168, %v285, 0.0
  %314 = vadd.xlane.f32.xlu0 %v313
  %v315 = vpop.xlane.xlu0 %314
  %v316 = vsel %vm168, %v290, 0.0
  %317 = vadd.xlane.f32.xlu0 %v316
  %v318 = vpop.xlane.xlu0 %317
  %v319 = vsel %vm168, %v295, 0.0
  %320 = vadd.xlane.f32.xlu0 %v319
  %v321 = vpop.xlane.xlu0 %320
  %v322 = vrcp.pop 16.0
  %v323 = vmul.f32 %v300, %v322
  %v324 = vmul.f32 %v303, %v322
  %v325 = vmul.f32 %v306, %v322
  %v326 = vmul.f32 %v309, %v322
  %v327 = vmul.f32 %v312, %v322
  %v328 = vmul.f32 %v315, %v322
  %v329 = vmul.f32 %v318, %v322
  %v330 = vmul.f32 %v321, %v322
  %v331 = vsub.f32 %v260, %v323
  %v332 = vsub.f32 %v265, %v324
  %v333 = vsub.f32 %v270, %v325
  %v334 = vsub.f32 %v275, %v326
  %v335 = vsub.f32 %v280, %v327
  %v336 = vsub.f32 %v285, %v328
  %v337 = vsub.f32 %v290, %v329
  %v338 = vsub.f32 %v295, %v330
  %v339 = vmul.f32 %v331, %v331
  %v340 = vmul.f32 %v332, %v332
  %v341 = vmul.f32 %v333, %v333
  %v342 = vmul.f32 %v334, %v334
  %v343 = vmul.f32 %v335, %v335
  %v344 = vmul.f32 %v336, %v336
  %v345 = vmul.f32 %v337, %v337
  %v346 = vmul.f32 %v338, %v338
  %v347 = vsel %vm168, %v339, 0.0
  %348 = vadd.xlane.f32.xlu0 %v347
  %v349 = vpop.xlane.xlu0 %348
  %v350 = vsel %vm168, %v340, 0.0
  %351 = vadd.xlane.f32.xlu0 %v350
  %v352 = vpop.xlane.xlu0 %351
  %v353 = vsel %vm168, %v341, 0.0
  %354 = vadd.xlane.f32.xlu0 %v353
  %v355 = vpop.xlane.xlu0 %354
  %v356 = vsel %vm168, %v342, 0.0
  %357 = vadd.xlane.f32.xlu0 %v356
  %v358 = vpop.xlane.xlu0 %357
  %v359 = vsel %vm168, %v343, 0.0
  %360 = vadd.xlane.f32.xlu0 %v359
  %v361 = vpop.xlane.xlu0 %360
  %v362 = vsel %vm168, %v344, 0.0
  %363 = vadd.xlane.f32.xlu0 %v362
  %v364 = vpop.xlane.xlu0 %363
  %v365 = vsel %vm168, %v345, 0.0
  %366 = vadd.xlane.f32.xlu0 %v365
  %v367 = vpop.xlane.xlu0 %366
  %v368 = vsel %vm168, %v346, 0.0
  %369 = vadd.xlane.f32.xlu0 %v368
  %v370 = vpop.xlane.xlu0 %369
  %v371 = vmul.f32 %v349, %v322
  %v372 = vmul.f32 %v352, %v322
  %v373 = vmul.f32 %v355, %v322
  %v374 = vmul.f32 %v358, %v322
  %v375 = vmul.f32 %v361, %v322
  %v376 = vmul.f32 %v364, %v322
  %v377 = vmul.f32 %v367, %v322
  %v378 = vmul.f32 %v370, %v322
  %v379 = vadd.f32 %v371, 1e-05
  %v380 = vadd.f32 %v372, 1e-05
  %v381 = vadd.f32 %v373, 1e-05
  %v382 = vadd.f32 %v374, 1e-05
  %v383 = vadd.f32 %v375, 1e-05
  %v384 = vadd.f32 %v376, 1e-05
  %v385 = vadd.f32 %v377, 1e-05
  %v386 = vadd.f32 %v378, 1e-05
  %v387 = vrsqrt.pop %v379
  %v388 = vrsqrt.pop %v380
  %v389 = vrsqrt.pop %v381
  %v390 = vrsqrt.pop %v382
  %v391 = vrsqrt.pop %v383
  %v392 = vrsqrt.pop %v384
  %v393 = vrsqrt.pop %v385
  %v394 = vrsqrt.pop %v386
  %v395 = vmul.f32 %v331, %v387
  %v396 = vmul.f32 %v332, %v388
  %v397 = vmul.f32 %v333, %v389
  %v398 = vmul.f32 %v334, %v390
  %v399 = vmul.f32 %v335, %v391
  %v400 = vmul.f32 %v336, %v392
  %v401 = vmul.f32 %v337, %v393
  %v402 = vmul.f32 %v338, %v394
  %v403 = vlaneseq
  %v404 = vshrl.u32 %v403, 7
  %v405 = vsub.s32 3, %v404
  %v406 = vrot.slane %v32, %v405
  %v407 = vmul.f32 %v395, %v406
  %v408 = vmul.f32 %v396, %v406
  %v409 = vmul.f32 %v397, %v406
  %v410 = vmul.f32 %v398, %v406
  %v411 = vmul.f32 %v399, %v406
  %v412 = vmul.f32 %v400, %v406
  %v413 = vmul.f32 %v401, %v406
  %v414 = vmul.f32 %v402, %v406
  %v415 = vlaneseq
  %v416 = vshrl.u32 %v415, 7
  %v417 = vsub.s32 4, %v416
  %v418 = vrot.slane %v32, %v417
  %v419 = vadd.f32 %v407, %v418
  %v420 = vadd.f32 %v408, %v418
  %v421 = vadd.f32 %v409, %v418
  %v422 = vadd.f32 %v410, %v418
  %v423 = vadd.f32 %v411, %v418
  %v424 = vadd.f32 %v412, %v418
  %v425 = vadd.f32 %v413, %v418
  %v426 = vadd.f32 %v414, %v418
  %v427 = vmax.f32 %v419, 0.0
  %v428 = vmax.f32 %v420, 0.0
  %v429 = vmax.f32 %v421, 0.0
  %v430 = vmax.f32 %v422, 0.0
  %v431 = vmax.f32 %v423, 0.0
  %v432 = vmax.f32 %v424, 0.0
  %v433 = vmax.f32 %v425, 0.0
  %v434 = vmax.f32 %v426, 0.0
  %v435 = vld [vmem:[%s1] sm:$0xff]
  %v436 = vld [vmem:[%s1 + $0x8] sm:$0xff]
  %v437 = vld [vmem:[%s1 + $0x10] sm:$0xff]
  %v438 = vld [vmem:[%s1 + $0x18] sm:$0xff]
  %v439 = vld [vmem:[%s1 + $0x20] sm:$0xff]
  %v440 = vld [vmem:[%s1 + $0x28] sm:$0xff]
  %v441 = vld [vmem:[%s1 + $0x30] sm:$0xff]
  %v442 = vld [vmem:[%s1 + $0x38] sm:$0xff]
  %v443 = vld [vmem:[%s5] sm:$0xff]
  %v444 = vld [vmem:[%s5 + $0x8] sm:$0xff]
  %v445 = vld [vmem:[%s5 + $0x10] sm:$0xff]
  %v446 = vld [vmem:[%s5 + $0x18] sm:$0xff]
  %vm447 = vcmask 261120
  %v449 = vsel %vm447, %v435, 0
  %v452 = vsel %vm447, %v436, 0
  %v455 = vsel %vm447, %v437, 0
  %v458 = vsel %vm447, %v438, 0
  %v461 = vsel %vm447, %v439, 0
  %v464 = vsel %vm447, %v440, 0
  %v467 = vsel %vm447, %v441, 0
  %v470 = vsel %vm447, %v442, 0
  %472 = vmatprep.subr.mxu0 0.0
  %473 = vmatpush1.msra.mxu0 %v443
  %474 = vmatprep.subr.mxu0 0.0
  %475 = vmatpush1.msra.mxu0 %v444
  %476 = vmatprep.subr.mxu0 0.0
  %477 = vmatpush1.msra.mxu0 %v445
  %478 = vmatprep.subr.mxu0 0.0
  %479 = vmatpush1.msra.mxu0 %v446
  %480 = vmatprep.subr.mxu0 0.0
  %481 = vmatpush1.msra.mxu0 0.0
  %482 = vmatprep.subr.mxu0 0.0
  %483 = vmatpush1.msra.mxu0 0.0
  %484 = vmatprep.subr.mxu0 0.0
  %485 = vmatpush1.msra.mxu0 0.0
  %486 = vmatprep.subr.mxu0 0.0
  %487 = vmatpush1.msra.mxu0 0.0
  %488 = vmatprep.subr.mxu0 0.0
  %489 = vmatpush1.msra.mxu0 0.0
  %490 = vmatprep.subr.mxu0 0.0
  %491 = vmatpush1.msra.mxu0 0.0
  %492 = vmatprep.subr.mxu0 0.0
  %493 = vmatpush1.msra.mxu0 0.0
  %494 = vmatprep.subr.mxu0 0.0
  %495 = vmatpush1.msra.mxu0 0.0
  %496 = vmatprep.subr.mxu0 0.0
  %497 = vmatpush1.msra.mxu0 0.0
  %498 = vmatprep.subr.mxu0 0.0
  %499 = vmatpush1.msra.mxu0 0.0
  %500 = vmatprep.subr.mxu0 0.0
  %501 = vmatpush1.msra.mxu0 0.0
  %502 = vmatprep.subr.mxu0 0.0
  %503 = vmatpush1.msra.mxu0 0.0
  %504 = vmatprep.subr.mxu0 0.0
  %505 = vmatpush1.msra.mxu0 0.0
  %506 = vmatprep.subr.mxu0 0.0
  %507 = vmatpush1.msra.mxu0 0.0
  %508 = vmatprep.subr.mxu0 0.0
  %509 = vmatpush1.msra.mxu0 0.0
  %510 = vmatprep.subr.mxu0 0.0
  %511 = vmatpush1.msra.mxu0 0.0
  %512 = vmatprep.subr.mxu0 0.0
  %513 = vmatpush1.msra.mxu0 0.0
  %514 = vmatprep.subr.mxu0 0.0
  %515 = vmatpush1.msra.mxu0 0.0
  %516 = vmatprep.subr.mxu0 0.0
  %517 = vmatpush1.msra.mxu0 0.0
  %518 = vmatprep.subr.mxu0 0.0
  %519 = vmatpush1.msra.mxu0 0.0
  %520 = vmatprep.subr.mxu0 0.0
  %521 = vmatpush1.msra.mxu0 0.0
  %522 = vmatprep.subr.mxu0 0.0
  %523 = vmatpush1.msra.mxu0 0.0
  %524 = vmatprep.subr.mxu0 0.0
  %525 = vmatpush1.msra.mxu0 0.0
  %526 = vmatprep.subr.mxu0 0.0
  %527 = vmatpush1.msra.mxu0 0.0
  %528 = vmatprep.subr.mxu0 0.0
  %529 = vmatpush1.msra.mxu0 0.0
  %530 = vmatprep.subr.mxu0 0.0
  %531 = vmatpush1.msra.mxu0 0.0
  %532 = vmatprep.subr.mxu0 0.0
  %533 = vmatpush1.msra.mxu0 0.0
  %534 = vmatprep.subr.mxu0 0.0
  %535 = vmatpush1.msra.mxu0 0.0
  %536 = vmatprep.mubr.f32.mxu0 0.0
  %537 = vmatmul.mubr.f32.gmra.mrb[0].mxu0 %v449
  %v538 = vpop.f32.mrb[0].mxu0
  %v539 = vadd.f32 0.0, %v538
  %v540 = vpop.f32.mrb[0].mxu0
  %541 = vmatprep.mubr.f32.mxu0 0.0
  %542 = vmatmul.mubr.f32.gmra.mrb[0].mxu0 %v452
  %v543 = vpop.f32.mrb[0].mxu0
  %v544 = vadd.f32 0.0, %v543
  %v545 = vpop.f32.mrb[0].mxu0
  %546 = vmatprep.mubr.f32.mxu0 0.0
  %547 = vmatmul.mubr.f32.gmra.mrb[0].mxu0 %v455
  %v548 = vpop.f32.mrb[0].mxu0
  %v549 = vadd.f32 0.0, %v548
  %v550 = vpop.f32.mrb[0].mxu0
  %551 = vmatprep.mubr.f32.mxu0 0.0
  %552 = vmatmul.mubr.f32.gmra.mrb[0].mxu0 %v458
  %v553 = vpop.f32.mrb[0].mxu0
  %v554 = vadd.f32 0.0, %v553
  %v555 = vpop.f32.mrb[0].mxu0
  %556 = vmatprep.mubr.f32.mxu0 0.0
  %557 = vmatmul.mubr.f32.gmra.mrb[0].mxu0 %v461
  %v558 = vpop.f32.mrb[0].mxu0
  %v559 = vadd.f32 0.0, %v558
  %v560 = vpop.f32.mrb[0].mxu0
  %561 = vmatprep.mubr.f32.mxu0 0.0
  %562 = vmatmul.mubr.f32.gmra.mrb[0].mxu0 %v464
  %v563 = vpop.f32.mrb[0].mxu0
  %v564 = vadd.f32 0.0, %v563
  %v565 = vpop.f32.mrb[0].mxu0
  %566 = vmatprep.mubr.f32.mxu0 0.0
  %567 = vmatmul.mubr.f32.gmra.mrb[0].mxu0 %v467
  %v568 = vpop.f32.mrb[0].mxu0
  %v569 = vadd.f32 0.0, %v568
  %v570 = vpop.f32.mrb[0].mxu0
  %571 = vmatprep.mubr.f32.mxu0 0.0
  %572 = vmatmul.mubr.f32.gmra.mrb[0].mxu0 %v470
  %v573 = vpop.f32.mrb[0].mxu0
  %v574 = vadd.f32 0.0, %v573
  %v575 = vpop.f32.mrb[0].mxu0
  %576 = vdwg.mxu0
  %v577 = vsel %vm168, %v539, 0.0
  %578 = vadd.xlane.f32.xlu0 %v577
  %v579 = vpop.xlane.xlu0 %578
  %v580 = vsel %vm168, %v544, 0.0
  %581 = vadd.xlane.f32.xlu0 %v580
  %v582 = vpop.xlane.xlu0 %581
  %v583 = vsel %vm168, %v549, 0.0
  %584 = vadd.xlane.f32.xlu0 %v583
  %v585 = vpop.xlane.xlu0 %584
  %v586 = vsel %vm168, %v554, 0.0
  %587 = vadd.xlane.f32.xlu0 %v586
  %v588 = vpop.xlane.xlu0 %587
  %v589 = vsel %vm168, %v559, 0.0
  %590 = vadd.xlane.f32.xlu0 %v589
  %v591 = vpop.xlane.xlu0 %590
  %v592 = vsel %vm168, %v564, 0.0
  %593 = vadd.xlane.f32.xlu0 %v592
  %v594 = vpop.xlane.xlu0 %593
  %v595 = vsel %vm168, %v569, 0.0
  %596 = vadd.xlane.f32.xlu0 %v595
  %v597 = vpop.xlane.xlu0 %596
  %v598 = vsel %vm168, %v574, 0.0
  %599 = vadd.xlane.f32.xlu0 %v598
  %v600 = vpop.xlane.xlu0 %599
  %v601 = vmul.f32 %v579, %v322
  %v602 = vmul.f32 %v582, %v322
  %v603 = vmul.f32 %v585, %v322
  %v604 = vmul.f32 %v588, %v322
  %v605 = vmul.f32 %v591, %v322
  %v606 = vmul.f32 %v594, %v322
  %v607 = vmul.f32 %v597, %v322
  %v608 = vmul.f32 %v600, %v322
  %v609 = vsub.f32 %v539, %v601
  %v610 = vsub.f32 %v544, %v602
  %v611 = vsub.f32 %v549, %v603
  %v612 = vsub.f32 %v554, %v604
  %v613 = vsub.f32 %v559, %v605
  %v614 = vsub.f32 %v564, %v606
  %v615 = vsub.f32 %v569, %v607
  %v616 = vsub.f32 %v574, %v608
  %v617 = vmul.f32 %v609, %v609
  %v618 = vmul.f32 %v610, %v610
  %v619 = vmul.f32 %v611, %v611
  %v620 = vmul.f32 %v612, %v612
  %v621 = vmul.f32 %v613, %v613
  %v622 = vmul.f32 %v614, %v614
  %v623 = vmul.f32 %v615, %v615
  %v624 = vmul.f32 %v616, %v616
  %v625 = vsel %vm168, %v617, 0.0
  %626 = vadd.xlane.f32.xlu0 %v625
  %v627 = vpop.xlane.xlu0 %626
  %v628 = vsel %vm168, %v618, 0.0
  %629 = vadd.xlane.f32.xlu0 %v628
  %v630 = vpop.xlane.xlu0 %629
  %v631 = vsel %vm168, %v619, 0.0
  %632 = vadd.xlane.f32.xlu0 %v631
  %v633 = vpop.xlane.xlu0 %632
  %v634 = vsel %vm168, %v620, 0.0
  %635 = vadd.xlane.f32.xlu0 %v634
  %v636 = vpop.xlane.xlu0 %635
  %v637 = vsel %vm168, %v621, 0.0
  %638 = vadd.xlane.f32.xlu0 %v637
  %v639 = vpop.xlane.xlu0 %638
  %v640 = vsel %vm168, %v622, 0.0
  %641 = vadd.xlane.f32.xlu0 %v640
  %v642 = vpop.xlane.xlu0 %641
  %v643 = vsel %vm168, %v623, 0.0
  %644 = vadd.xlane.f32.xlu0 %v643
  %v645 = vpop.xlane.xlu0 %644
  %v646 = vsel %vm168, %v624, 0.0
  %647 = vadd.xlane.f32.xlu0 %v646
  %v648 = vpop.xlane.xlu0 %647
  %v649 = vmul.f32 %v627, %v322
  %v650 = vmul.f32 %v630, %v322
  %v651 = vmul.f32 %v633, %v322
  %v652 = vmul.f32 %v636, %v322
  %v653 = vmul.f32 %v639, %v322
  %v654 = vmul.f32 %v642, %v322
  %v655 = vmul.f32 %v645, %v322
  %v656 = vmul.f32 %v648, %v322
  %v657 = vadd.f32 %v649, 1e-05
  %v658 = vadd.f32 %v650, 1e-05
  %v659 = vadd.f32 %v651, 1e-05
  %v660 = vadd.f32 %v652, 1e-05
  %v661 = vadd.f32 %v653, 1e-05
  %v662 = vadd.f32 %v654, 1e-05
  %v663 = vadd.f32 %v655, 1e-05
  %v664 = vadd.f32 %v656, 1e-05
  %v665 = vrsqrt.pop %v657
  %v666 = vrsqrt.pop %v658
  %v667 = vrsqrt.pop %v659
  %v668 = vrsqrt.pop %v660
  %v669 = vrsqrt.pop %v661
  %v670 = vrsqrt.pop %v662
  %v671 = vrsqrt.pop %v663
  %v672 = vrsqrt.pop %v664
  %v673 = vmul.f32 %v609, %v665
  %v674 = vmul.f32 %v610, %v666
  %v675 = vmul.f32 %v611, %v667
  %v676 = vmul.f32 %v612, %v668
  %v677 = vmul.f32 %v613, %v669
  %v678 = vmul.f32 %v614, %v670
  %v679 = vmul.f32 %v615, %v671
  %v680 = vmul.f32 %v616, %v672
  %v681 = vlaneseq
  %v682 = vshrl.u32 %v681, 7
  %v683 = vsub.s32 5, %v682
  %v684 = vrot.slane %v32, %v683
  %v685 = vmul.f32 %v673, %v684
  %v686 = vmul.f32 %v674, %v684
  %v687 = vmul.f32 %v675, %v684
  %v688 = vmul.f32 %v676, %v684
  %v689 = vmul.f32 %v677, %v684
  %v690 = vmul.f32 %v678, %v684
  %v691 = vmul.f32 %v679, %v684
  %v692 = vmul.f32 %v680, %v684
  %v693 = vlaneseq
  %v694 = vshrl.u32 %v693, 7
  %v695 = vsub.s32 6, %v694
  %v696 = vrot.slane %v32, %v695
  %v697 = vadd.f32 %v685, %v696
  %v698 = vadd.f32 %v686, %v696
  %v699 = vadd.f32 %v687, %v696
  %v700 = vadd.f32 %v688, %v696
  %v701 = vadd.f32 %v689, %v696
  %v702 = vadd.f32 %v690, %v696
  %v703 = vadd.f32 %v691, %v696
  %v704 = vadd.f32 %v692, %v696
  %v705 = vmax.f32 %v697, 0.0
  %v706 = vmax.f32 %v698, 0.0
  %v707 = vmax.f32 %v699, 0.0
  %v708 = vmax.f32 %v700, 0.0
  %v709 = vmax.f32 %v701, 0.0
  %v710 = vmax.f32 %v702, 0.0
  %v711 = vmax.f32 %v703, 0.0
  %v712 = vmax.f32 %v704, 0.0
  %v713 = vld [vmem:[%s6] sm:$0xff]
  %v714 = vld [vmem:[%s6 + $0x8] sm:$0xff]
  %s715 = scalar_lea.vmem %s6, 16
  %v716 = vld [vmem:[%s715] sm:$0xff]
  %v717 = vld [vmem:[%s715 + $0x8] sm:$0xff]
  %v719 = vsel %vm168, %v705, 0
  %v722 = vsel %vm168, %v706, 0
  %v725 = vsel %vm168, %v707, 0
  %v728 = vsel %vm168, %v708, 0
  %v731 = vsel %vm168, %v709, 0
  %v734 = vsel %vm168, %v710, 0
  %v737 = vsel %vm168, %v711, 0
  %v740 = vsel %vm168, %v712, 0
  %742 = vmatprep.subr.mxu0 0.0
  %743 = vmatpush1.msra.mxu0 %v716
  %744 = vmatprep.subr.mxu0 0.0
  %745 = vmatpush1.msra.mxu0 %v717
  %746 = vmatprep.subr.mxu0 0.0
  %747 = vmatpush1.msra.mxu0 0.0
  %748 = vmatprep.subr.mxu0 0.0
  %749 = vmatpush1.msra.mxu0 0.0
  %750 = vmatprep.subr.mxu0 0.0
  %751 = vmatpush1.msra.mxu0 0.0
  %752 = vmatprep.subr.mxu0 0.0
  %753 = vmatpush1.msra.mxu0 0.0
  %754 = vmatprep.subr.mxu0 0.0
  %755 = vmatpush1.msra.mxu0 0.0
  %756 = vmatprep.subr.mxu0 0.0
  %757 = vmatpush1.msra.mxu0 0.0
  %758 = vmatprep.subr.mxu0 0.0
  %759 = vmatpush1.msra.mxu0 0.0
  %760 = vmatprep.subr.mxu0 0.0
  %761 = vmatpush1.msra.mxu0 0.0
  %762 = vmatprep.subr.mxu0 0.0
  %763 = vmatpush1.msra.mxu0 0.0
  %764 = vmatprep.subr.mxu0 0.0
  %765 = vmatpush1.msra.mxu0 0.0
  %766 = vmatprep.subr.mxu0 0.0
  %767 = vmatpush1.msra.mxu0 0.0
  %768 = vmatprep.subr.mxu0 0.0
  %769 = vmatpush1.msra.mxu0 0.0
  %770 = vmatprep.subr.mxu0 0.0
  %771 = vmatpush1.msra.mxu0 0.0
  %772 = vmatprep.subr.mxu0 0.0
  %773 = vmatpush1.msra.mxu0 0.0
  %774 = vmatprep.subr.mxu0 0.0
  %775 = vmatpush1.msra.mxu0 0.0
  %776 = vmatprep.subr.mxu0 0.0
  %777 = vmatpush1.msra.mxu0 0.0
  %778 = vmatprep.subr.mxu0 0.0
  %779 = vmatpush1.msra.mxu0 0.0
  %780 = vmatprep.subr.mxu0 0.0
  %781 = vmatpush1.msra.mxu0 0.0
  %782 = vmatprep.subr.mxu0 0.0
  %783 = vmatpush1.msra.mxu0 0.0
  %784 = vmatprep.subr.mxu0 0.0
  %785 = vmatpush1.msra.mxu0 0.0
  %786 = vmatprep.subr.mxu0 0.0
  %787 = vmatpush1.msra.mxu0 0.0
  %788 = vmatprep.subr.mxu0 0.0
  %789 = vmatpush1.msra.mxu0 0.0
  %790 = vmatprep.subr.mxu0 0.0
  %791 = vmatpush1.msra.mxu0 0.0
  %792 = vmatprep.subr.mxu0 0.0
  %793 = vmatpush1.msra.mxu0 0.0
  %794 = vmatprep.subr.mxu0 0.0
  %795 = vmatpush1.msra.mxu0 0.0
  %796 = vmatprep.subr.mxu0 0.0
  %797 = vmatpush1.msra.mxu0 0.0
  %798 = vmatprep.subr.mxu0 0.0
  %799 = vmatpush1.msra.mxu0 0.0
  %800 = vmatprep.subr.mxu0 0.0
  %801 = vmatpush1.msra.mxu0 0.0
  %802 = vmatprep.subr.mxu0 0.0
  %803 = vmatpush1.msra.mxu0 0.0
  %804 = vmatprep.subr.mxu0 0.0
  %805 = vmatpush1.msra.mxu0 0.0
  %806 = vmatprep.mubr.f32.mxu0 0.0
  %807 = vmatmul.mubr.f32.gmra.mrb[0].mxu0 %v719
  %v808 = vpop.f32.mrb[0].mxu0
  %v809 = vadd.f32 0.0, %v808
  %v810 = vpop.f32.mrb[0].mxu0
  %811 = vmatprep.mubr.f32.mxu0 0.0
  %812 = vmatmul.mubr.f32.gmra.mrb[0].mxu0 %v722
  %v813 = vpop.f32.mrb[0].mxu0
  %v814 = vadd.f32 0.0, %v813
  %v815 = vpop.f32.mrb[0].mxu0
  %816 = vmatprep.mubr.f32.mxu0 0.0
  %817 = vmatmul.mubr.f32.gmra.mrb[0].mxu0 %v725
  %v818 = vpop.f32.mrb[0].mxu0
  %v819 = vadd.f32 0.0, %v818
  %v820 = vpop.f32.mrb[0].mxu0
  %821 = vmatprep.mubr.f32.mxu0 0.0
  %822 = vmatmul.mubr.f32.gmra.mrb[0].mxu0 %v728
  %v823 = vpop.f32.mrb[0].mxu0
  %v824 = vadd.f32 0.0, %v823
  %v825 = vpop.f32.mrb[0].mxu0
  %826 = vmatprep.mubr.f32.mxu0 0.0
  %827 = vmatmul.mubr.f32.gmra.mrb[0].mxu0 %v731
  %v828 = vpop.f32.mrb[0].mxu0
  %v829 = vadd.f32 0.0, %v828
  %v830 = vpop.f32.mrb[0].mxu0
  %831 = vmatprep.mubr.f32.mxu0 0.0
  %832 = vmatmul.mubr.f32.gmra.mrb[0].mxu0 %v734
  %v833 = vpop.f32.mrb[0].mxu0
  %v834 = vadd.f32 0.0, %v833
  %v835 = vpop.f32.mrb[0].mxu0
  %836 = vmatprep.mubr.f32.mxu0 0.0
  %837 = vmatmul.mubr.f32.gmra.mrb[0].mxu0 %v737
  %v838 = vpop.f32.mrb[0].mxu0
  %v839 = vadd.f32 0.0, %v838
  %v840 = vpop.f32.mrb[0].mxu0
  %841 = vmatprep.mubr.f32.mxu0 0.0
  %842 = vmatmul.mubr.f32.gmra.mrb[0].mxu0 %v740
  %v843 = vpop.f32.mrb[0].mxu0
  %v844 = vadd.f32 0.0, %v843
  %v845 = vpop.f32.mrb[0].mxu0
  %846 = vdwg.mxu0
  %v848 = vsel %vm168, %v427, 0
  %v851 = vsel %vm168, %v428, 0
  %v854 = vsel %vm168, %v429, 0
  %v857 = vsel %vm168, %v430, 0
  %v860 = vsel %vm168, %v431, 0
  %v863 = vsel %vm168, %v432, 0
  %v866 = vsel %vm168, %v433, 0
  %v869 = vsel %vm168, %v434, 0
  %871 = vmatprep.subr.mxu0 0.0
  %872 = vmatpush1.msra.mxu0 %v713
  %873 = vmatprep.subr.mxu0 0.0
  %874 = vmatpush1.msra.mxu0 %v714
  %875 = vmatprep.subr.mxu0 0.0
  %876 = vmatpush1.msra.mxu0 0.0
  %877 = vmatprep.subr.mxu0 0.0
  %878 = vmatpush1.msra.mxu0 0.0
  %879 = vmatprep.subr.mxu0 0.0
  %880 = vmatpush1.msra.mxu0 0.0
  %881 = vmatprep.subr.mxu0 0.0
  %882 = vmatpush1.msra.mxu0 0.0
  %883 = vmatprep.subr.mxu0 0.0
  %884 = vmatpush1.msra.mxu0 0.0
  %885 = vmatprep.subr.mxu0 0.0
  %886 = vmatpush1.msra.mxu0 0.0
  %887 = vmatprep.subr.mxu0 0.0
  %888 = vmatpush1.msra.mxu0 0.0
  %889 = vmatprep.subr.mxu0 0.0
  %890 = vmatpush1.msra.mxu0 0.0
  %891 = vmatprep.subr.mxu0 0.0
  %892 = vmatpush1.msra.mxu0 0.0
  %893 = vmatprep.subr.mxu0 0.0
  %894 = vmatpush1.msra.mxu0 0.0
  %895 = vmatprep.subr.mxu0 0.0
  %896 = vmatpush1.msra.mxu0 0.0
  %897 = vmatprep.subr.mxu0 0.0
  %898 = vmatpush1.msra.mxu0 0.0
  %899 = vmatprep.subr.mxu0 0.0
  %900 = vmatpush1.msra.mxu0 0.0
  %901 = vmatprep.subr.mxu0 0.0
  %902 = vmatpush1.msra.mxu0 0.0
  %903 = vmatprep.subr.mxu0 0.0
  %904 = vmatpush1.msra.mxu0 0.0
  %905 = vmatprep.subr.mxu0 0.0
  %906 = vmatpush1.msra.mxu0 0.0
  %907 = vmatprep.subr.mxu0 0.0
  %908 = vmatpush1.msra.mxu0 0.0
  %909 = vmatprep.subr.mxu0 0.0
  %910 = vmatpush1.msra.mxu0 0.0
  %911 = vmatprep.subr.mxu0 0.0
  %912 = vmatpush1.msra.mxu0 0.0
  %913 = vmatprep.subr.mxu0 0.0
  %914 = vmatpush1.msra.mxu0 0.0
  %915 = vmatprep.subr.mxu0 0.0
  %916 = vmatpush1.msra.mxu0 0.0
  %917 = vmatprep.subr.mxu0 0.0
  %918 = vmatpush1.msra.mxu0 0.0
  %919 = vmatprep.subr.mxu0 0.0
  %920 = vmatpush1.msra.mxu0 0.0
  %921 = vmatprep.subr.mxu0 0.0
  %922 = vmatpush1.msra.mxu0 0.0
  %923 = vmatprep.subr.mxu0 0.0
  %924 = vmatpush1.msra.mxu0 0.0
  %925 = vmatprep.subr.mxu0 0.0
  %926 = vmatpush1.msra.mxu0 0.0
  %927 = vmatprep.subr.mxu0 0.0
  %928 = vmatpush1.msra.mxu0 0.0
  %929 = vmatprep.subr.mxu0 0.0
  %930 = vmatpush1.msra.mxu0 0.0
  %931 = vmatprep.subr.mxu0 0.0
  %932 = vmatpush1.msra.mxu0 0.0
  %933 = vmatprep.subr.mxu0 0.0
  %934 = vmatpush1.msra.mxu0 0.0
  %935 = vmatprep.mubr.f32.mxu0 0.0
  %936 = vmatmul.mubr.f32.gmra.mrb[0].mxu0 %v848
  %v937 = vpop.f32.mrb[0].mxu0
  %v938 = vadd.f32 %v809, %v937
  %v939 = vpop.f32.mrb[0].mxu0
  %940 = vmatprep.mubr.f32.mxu0 0.0
  %941 = vmatmul.mubr.f32.gmra.mrb[0].mxu0 %v851
  %v942 = vpop.f32.mrb[0].mxu0
  %v943 = vadd.f32 %v814, %v942
  %v944 = vpop.f32.mrb[0].mxu0
  %945 = vmatprep.mubr.f32.mxu0 0.0
  %946 = vmatmul.mubr.f32.gmra.mrb[0].mxu0 %v854
  %v947 = vpop.f32.mrb[0].mxu0
  %v948 = vadd.f32 %v819, %v947
  %v949 = vpop.f32.mrb[0].mxu0
  %950 = vmatprep.mubr.f32.mxu0 0.0
  %951 = vmatmul.mubr.f32.gmra.mrb[0].mxu0 %v857
  %v952 = vpop.f32.mrb[0].mxu0
  %v953 = vadd.f32 %v824, %v952
  %v954 = vpop.f32.mrb[0].mxu0
  %955 = vmatprep.mubr.f32.mxu0 0.0
  %956 = vmatmul.mubr.f32.gmra.mrb[0].mxu0 %v860
  %v957 = vpop.f32.mrb[0].mxu0
  %v958 = vadd.f32 %v829, %v957
  %v959 = vpop.f32.mrb[0].mxu0
  %960 = vmatprep.mubr.f32.mxu0 0.0
  %961 = vmatmul.mubr.f32.gmra.mrb[0].mxu0 %v863
  %v962 = vpop.f32.mrb[0].mxu0
  %v963 = vadd.f32 %v834, %v962
  %v964 = vpop.f32.mrb[0].mxu0
  %965 = vmatprep.mubr.f32.mxu0 0.0
  %966 = vmatmul.mubr.f32.gmra.mrb[0].mxu0 %v866
  %v967 = vpop.f32.mrb[0].mxu0
  %v968 = vadd.f32 %v839, %v967
  %v969 = vpop.f32.mrb[0].mxu0
  %970 = vmatprep.mubr.f32.mxu0 0.0
  %971 = vmatmul.mubr.f32.gmra.mrb[0].mxu0 %v869
  %v972 = vpop.f32.mrb[0].mxu0
  %v973 = vadd.f32 %v844, %v972
  %v974 = vpop.f32.mrb[0].mxu0
  %975 = vdwg.mxu0
  %v976 = vld [vmem:[%s2] sm:$0xff]
  %v977 = vld [vmem:[%s2 + $0x8] sm:$0xff]
  %v978 = vld [vmem:[%s2 + $0x10] sm:$0xff]
  %v979 = vld [vmem:[%s2 + $0x18] sm:$0xff]
  %v980 = vld [vmem:[%s2 + $0x20] sm:$0xff]
  %v981 = vld [vmem:[%s2 + $0x28] sm:$0xff]
  %v982 = vld [vmem:[%s2 + $0x30] sm:$0xff]
  %v983 = vld [vmem:[%s2 + $0x38] sm:$0xff]
  %s984 = scalar_lea.vmem %s6, 32
  %v985 = vld [vmem:[%s984] sm:$0xff]
  %v986 = vld [vmem:[%s984 + $0x8] sm:$0xff]
  %v988 = vsel %vm168, %v976, 0
  %v991 = vsel %vm168, %v977, 0
  %v994 = vsel %vm168, %v978, 0
  %v997 = vsel %vm168, %v979, 0
  %v1000 = vsel %vm168, %v980, 0
  %v1003 = vsel %vm168, %v981, 0
  %v1006 = vsel %vm168, %v982, 0
  %v1009 = vsel %vm168, %v983, 0
  %1011 = vmatprep.subr.mxu0 0.0
  %1012 = vmatpush1.msra.mxu0 %v985
  %1013 = vmatprep.subr.mxu0 0.0
  %1014 = vmatpush1.msra.mxu0 %v986
  %1015 = vmatprep.subr.mxu0 0.0
  %1016 = vmatpush1.msra.mxu0 0.0
  %1017 = vmatprep.subr.mxu0 0.0
  %1018 = vmatpush1.msra.mxu0 0.0
  %1019 = vmatprep.subr.mxu0 0.0
  %1020 = vmatpush1.msra.mxu0 0.0
  %1021 = vmatprep.subr.mxu0 0.0
  %1022 = vmatpush1.msra.mxu0 0.0
  %1023 = vmatprep.subr.mxu0 0.0
  %1024 = vmatpush1.msra.mxu0 0.0
  %1025 = vmatprep.subr.mxu0 0.0
  %1026 = vmatpush1.msra.mxu0 0.0
  %1027 = vmatprep.subr.mxu0 0.0
  %1028 = vmatpush1.msra.mxu0 0.0
  %1029 = vmatprep.subr.mxu0 0.0
  %1030 = vmatpush1.msra.mxu0 0.0
  %1031 = vmatprep.subr.mxu0 0.0
  %1032 = vmatpush1.msra.mxu0 0.0
  %1033 = vmatprep.subr.mxu0 0.0
  %1034 = vmatpush1.msra.mxu0 0.0
  %1035 = vmatprep.subr.mxu0 0.0
  %1036 = vmatpush1.msra.mxu0 0.0
  %1037 = vmatprep.subr.mxu0 0.0
  %1038 = vmatpush1.msra.mxu0 0.0
  %1039 = vmatprep.subr.mxu0 0.0
  %1040 = vmatpush1.msra.mxu0 0.0
  %1041 = vmatprep.subr.mxu0 0.0
  %1042 = vmatpush1.msra.mxu0 0.0
  %1043 = vmatprep.subr.mxu0 0.0
  %1044 = vmatpush1.msra.mxu0 0.0
  %1045 = vmatprep.subr.mxu0 0.0
  %1046 = vmatpush1.msra.mxu0 0.0
  %1047 = vmatprep.subr.mxu0 0.0
  %1048 = vmatpush1.msra.mxu0 0.0
  %1049 = vmatprep.subr.mxu0 0.0
  %1050 = vmatpush1.msra.mxu0 0.0
  %1051 = vmatprep.subr.mxu0 0.0
  %1052 = vmatpush1.msra.mxu0 0.0
  %1053 = vmatprep.subr.mxu0 0.0
  %1054 = vmatpush1.msra.mxu0 0.0
  %1055 = vmatprep.subr.mxu0 0.0
  %1056 = vmatpush1.msra.mxu0 0.0
  %1057 = vmatprep.subr.mxu0 0.0
  %1058 = vmatpush1.msra.mxu0 0.0
  %1059 = vmatprep.subr.mxu0 0.0
  %1060 = vmatpush1.msra.mxu0 0.0
  %1061 = vmatprep.subr.mxu0 0.0
  %1062 = vmatpush1.msra.mxu0 0.0
  %1063 = vmatprep.subr.mxu0 0.0
  %1064 = vmatpush1.msra.mxu0 0.0
  %1065 = vmatprep.subr.mxu0 0.0
  %1066 = vmatpush1.msra.mxu0 0.0
  %1067 = vmatprep.subr.mxu0 0.0
  %1068 = vmatpush1.msra.mxu0 0.0
  %1069 = vmatprep.subr.mxu0 0.0
  %1070 = vmatpush1.msra.mxu0 0.0
  %1071 = vmatprep.subr.mxu0 0.0
  %1072 = vmatpush1.msra.mxu0 0.0
  %1073 = vmatprep.subr.mxu0 0.0
  %1074 = vmatpush1.msra.mxu0 0.0
  %1075 = vmatprep.mubr.f32.mxu0 0.0
  %1076 = vmatmul.mubr.f32.gmra.mrb[0].mxu0 %v988
  %v1077 = vpop.f32.mrb[0].mxu0
  %v1078 = vadd.f32 0.0, %v1077
  %v1079 = vpop.f32.mrb[0].mxu0
  %1080 = vmatprep.mubr.f32.mxu0 0.0
  %1081 = vmatmul.mubr.f32.gmra.mrb[0].mxu0 %v991
  %v1082 = vpop.f32.mrb[0].mxu0
  %v1083 = vadd.f32 0.0, %v1082
  %v1084 = vpop.f32.mrb[0].mxu0
  %1085 = vmatprep.mubr.f32.mxu0 0.0
  %1086 = vmatmul.mubr.f32.gmra.mrb[0].mxu0 %v994
  %v1087 = vpop.f32.mrb[0].mxu0
  %v1088 = vadd.f32 0.0, %v1087
  %v1089 = vpop.f32.mrb[0].mxu0
  %1090 = vmatprep.mubr.f32.mxu0 0.0
  %1091 = vmatmul.mubr.f32.gmra.mrb[0].mxu0 %v997
  %v1092 = vpop.f32.mrb[0].mxu0
  %v1093 = vadd.f32 0.0, %v1092
  %v1094 = vpop.f32.mrb[0].mxu0
  %1095 = vmatprep.mubr.f32.mxu0 0.0
  %1096 = vmatmul.mubr.f32.gmra.mrb[0].mxu0 %v1000
  %v1097 = vpop.f32.mrb[0].mxu0
  %v1098 = vadd.f32 0.0, %v1097
  %v1099 = vpop.f32.mrb[0].mxu0
  %1100 = vmatprep.mubr.f32.mxu0 0.0
  %1101 = vmatmul.mubr.f32.gmra.mrb[0].mxu0 %v1003
  %v1102 = vpop.f32.mrb[0].mxu0
  %v1103 = vadd.f32 0.0, %v1102
  %v1104 = vpop.f32.mrb[0].mxu0
  %1105 = vmatprep.mubr.f32.mxu0 0.0
  %1106 = vmatmul.mubr.f32.gmra.mrb[0].mxu0 %v1006
  %v1107 = vpop.f32.mrb[0].mxu0
  %v1108 = vadd.f32 0.0, %v1107
  %v1109 = vpop.f32.mrb[0].mxu0
  %1110 = vmatprep.mubr.f32.mxu0 0.0
  %1111 = vmatmul.mubr.f32.gmra.mrb[0].mxu0 %v1009
  %v1112 = vpop.f32.mrb[0].mxu0
  %v1113 = vadd.f32 0.0, %v1112
  %v1114 = vpop.f32.mrb[0].mxu0
  %1115 = vdwg.mxu0
  %v1116 = vadd.f32 %v938, %v1078
  %v1117 = vadd.f32 %v943, %v1083
  %v1118 = vadd.f32 %v948, %v1088
  %v1119 = vadd.f32 %v953, %v1093
  %v1120 = vadd.f32 %v958, %v1098
  %v1121 = vadd.f32 %v963, %v1103
  %v1122 = vadd.f32 %v968, %v1108
  %v1123 = vadd.f32 %v973, %v1113
  %v1124 = vsel %vm447, %v1116, 0.0
  %1125 = vadd.xlane.f32.xlu0 %v1124
  %v1126 = vpop.xlane.xlu0 %1125
  %v1127 = vsel %vm447, %v1117, 0.0
  %1128 = vadd.xlane.f32.xlu0 %v1127
  %v1129 = vpop.xlane.xlu0 %1128
  %v1130 = vsel %vm447, %v1118, 0.0
  %1131 = vadd.xlane.f32.xlu0 %v1130
  %v1132 = vpop.xlane.xlu0 %1131
  %v1133 = vsel %vm447, %v1119, 0.0
  %1134 = vadd.xlane.f32.xlu0 %v1133
  %v1135 = vpop.xlane.xlu0 %1134
  %v1136 = vsel %vm447, %v1120, 0.0
  %1137 = vadd.xlane.f32.xlu0 %v1136
  %v1138 = vpop.xlane.xlu0 %1137
  %v1139 = vsel %vm447, %v1121, 0.0
  %1140 = vadd.xlane.f32.xlu0 %v1139
  %v1141 = vpop.xlane.xlu0 %1140
  %v1142 = vsel %vm447, %v1122, 0.0
  %1143 = vadd.xlane.f32.xlu0 %v1142
  %v1144 = vpop.xlane.xlu0 %1143
  %v1145 = vsel %vm447, %v1123, 0.0
  %1146 = vadd.xlane.f32.xlu0 %v1145
  %v1147 = vpop.xlane.xlu0 %1146
  %v1148 = vrcp.pop 32.0
  %v1149 = vmul.f32 %v1126, %v1148
  %v1150 = vmul.f32 %v1129, %v1148
  %v1151 = vmul.f32 %v1132, %v1148
  %v1152 = vmul.f32 %v1135, %v1148
  %v1153 = vmul.f32 %v1138, %v1148
  %v1154 = vmul.f32 %v1141, %v1148
  %v1155 = vmul.f32 %v1144, %v1148
  %v1156 = vmul.f32 %v1147, %v1148
  %v1157 = vsub.f32 %v1116, %v1149
  %v1158 = vsub.f32 %v1117, %v1150
  %v1159 = vsub.f32 %v1118, %v1151
  %v1160 = vsub.f32 %v1119, %v1152
  %v1161 = vsub.f32 %v1120, %v1153
  %v1162 = vsub.f32 %v1121, %v1154
  %v1163 = vsub.f32 %v1122, %v1155
  %v1164 = vsub.f32 %v1123, %v1156
  %v1165 = vmul.f32 %v1157, %v1157
  %v1166 = vmul.f32 %v1158, %v1158
  %v1167 = vmul.f32 %v1159, %v1159
  %v1168 = vmul.f32 %v1160, %v1160
  %v1169 = vmul.f32 %v1161, %v1161
  %v1170 = vmul.f32 %v1162, %v1162
  %v1171 = vmul.f32 %v1163, %v1163
  %v1172 = vmul.f32 %v1164, %v1164
  %v1173 = vsel %vm447, %v1165, 0.0
  %1174 = vadd.xlane.f32.xlu0 %v1173
  %v1175 = vpop.xlane.xlu0 %1174
  %v1176 = vsel %vm447, %v1166, 0.0
  %1177 = vadd.xlane.f32.xlu0 %v1176
  %v1178 = vpop.xlane.xlu0 %1177
  %v1179 = vsel %vm447, %v1167, 0.0
  %1180 = vadd.xlane.f32.xlu0 %v1179
  %v1181 = vpop.xlane.xlu0 %1180
  %v1182 = vsel %vm447, %v1168, 0.0
  %1183 = vadd.xlane.f32.xlu0 %v1182
  %v1184 = vpop.xlane.xlu0 %1183
  %v1185 = vsel %vm447, %v1169, 0.0
  %1186 = vadd.xlane.f32.xlu0 %v1185
  %v1187 = vpop.xlane.xlu0 %1186
  %v1188 = vsel %vm447, %v1170, 0.0
  %1189 = vadd.xlane.f32.xlu0 %v1188
  %v1190 = vpop.xlane.xlu0 %1189
  %v1191 = vsel %vm447, %v1171, 0.0
  %1192 = vadd.xlane.f32.xlu0 %v1191
  %v1193 = vpop.xlane.xlu0 %1192
  %v1194 = vsel %vm447, %v1172, 0.0
  %1195 = vadd.xlane.f32.xlu0 %v1194
  %v1196 = vpop.xlane.xlu0 %1195
  %v1197 = vmul.f32 %v1175, %v1148
  %v1198 = vmul.f32 %v1178, %v1148
  %v1199 = vmul.f32 %v1181, %v1148
  %v1200 = vmul.f32 %v1184, %v1148
  %v1201 = vmul.f32 %v1187, %v1148
  %v1202 = vmul.f32 %v1190, %v1148
  %v1203 = vmul.f32 %v1193, %v1148
  %v1204 = vmul.f32 %v1196, %v1148
  %v1205 = vadd.f32 %v1197, 1e-05
  %v1206 = vadd.f32 %v1198, 1e-05
  %v1207 = vadd.f32 %v1199, 1e-05
  %v1208 = vadd.f32 %v1200, 1e-05
  %v1209 = vadd.f32 %v1201, 1e-05
  %v1210 = vadd.f32 %v1202, 1e-05
  %v1211 = vadd.f32 %v1203, 1e-05
  %v1212 = vadd.f32 %v1204, 1e-05
  %v1213 = vrsqrt.pop %v1205
  %v1214 = vrsqrt.pop %v1206
  %v1215 = vrsqrt.pop %v1207
  %v1216 = vrsqrt.pop %v1208
  %v1217 = vrsqrt.pop %v1209
  %v1218 = vrsqrt.pop %v1210
  %v1219 = vrsqrt.pop %v1211
  %v1220 = vrsqrt.pop %v1212
  %v1221 = vmul.f32 %v1157, %v1213
  %v1222 = vmul.f32 %v1158, %v1214
  %v1223 = vmul.f32 %v1159, %v1215
  %v1224 = vmul.f32 %v1160, %v1216
  %v1225 = vmul.f32 %v1161, %v1217
  %v1226 = vmul.f32 %v1162, %v1218
  %v1227 = vmul.f32 %v1163, %v1219
  %v1228 = vmul.f32 %v1164, %v1220
  %v1229 = vlaneseq
  %v1230 = vshrl.u32 %v1229, 7
  %v1231 = vsub.s32 0, %v1230
  %v1232 = vrot.slane %v33, %v1231
  %v1233 = vmul.f32 %v1221, %v1232
  %v1234 = vmul.f32 %v1222, %v1232
  %v1235 = vmul.f32 %v1223, %v1232
  %v1236 = vmul.f32 %v1224, %v1232
  %v1237 = vmul.f32 %v1225, %v1232
  %v1238 = vmul.f32 %v1226, %v1232
  %v1239 = vmul.f32 %v1227, %v1232
  %v1240 = vmul.f32 %v1228, %v1232
  %v1241 = vlaneseq
  %v1242 = vshrl.u32 %v1241, 7
  %v1243 = vsub.s32 1, %v1242
  %v1244 = vrot.slane %v33, %v1243
  %v1245 = vadd.f32 %v1233, %v1244
  %v1246 = vadd.f32 %v1234, %v1244
  %v1247 = vadd.f32 %v1235, %v1244
  %v1248 = vadd.f32 %v1236, %v1244
  %v1249 = vadd.f32 %v1237, %v1244
  %v1250 = vadd.f32 %v1238, %v1244
  %v1251 = vadd.f32 %v1239, %v1244
  %v1252 = vadd.f32 %v1240, %v1244
  %v1253 = vmax.f32 %v1245, 0.0
  %v1254 = vmax.f32 %v1246, 0.0
  %v1255 = vmax.f32 %v1247, 0.0
  %v1256 = vmax.f32 %v1248, 0.0
  %v1257 = vmax.f32 %v1249, 0.0
  %v1258 = vmax.f32 %v1250, 0.0
  %v1259 = vmax.f32 %v1251, 0.0
  %v1260 = vmax.f32 %v1252, 0.0
  %v1261 = vld [vmem:[%s7] sm:$0xff]
  %v1262 = vld [vmem:[%s7 + $0x8] sm:$0xff]
  %v1263 = vld [vmem:[%s7 + $0x10] sm:$0xff]
  %v1264 = vld [vmem:[%s7 + $0x18] sm:$0xff]
  %v1266 = vsel %vm447, %v1253, 0
  %v1269 = vsel %vm447, %v1254, 0
  %v1272 = vsel %vm447, %v1255, 0
  %v1275 = vsel %vm447, %v1256, 0
  %v1278 = vsel %vm447, %v1257, 0
  %v1281 = vsel %vm447, %v1258, 0
  %v1284 = vsel %vm447, %v1259, 0
  %v1287 = vsel %vm447, %v1260, 0
  %1289 = vmatprep.subr.mxu0 0.0
  %1290 = vmatpush1.msra.mxu0 %v1261
  %1291 = vmatprep.subr.mxu0 0.0
  %1292 = vmatpush1.msra.mxu0 %v1262
  %1293 = vmatprep.subr.mxu0 0.0
  %1294 = vmatpush1.msra.mxu0 %v1263
  %1295 = vmatprep.subr.mxu0 0.0
  %1296 = vmatpush1.msra.mxu0 %v1264
  %1297 = vmatprep.subr.mxu0 0.0
  %1298 = vmatpush1.msra.mxu0 0.0
  %1299 = vmatprep.subr.mxu0 0.0
  %1300 = vmatpush1.msra.mxu0 0.0
  %1301 = vmatprep.subr.mxu0 0.0
  %1302 = vmatpush1.msra.mxu0 0.0
  %1303 = vmatprep.subr.mxu0 0.0
  %1304 = vmatpush1.msra.mxu0 0.0
  %1305 = vmatprep.subr.mxu0 0.0
  %1306 = vmatpush1.msra.mxu0 0.0
  %1307 = vmatprep.subr.mxu0 0.0
  %1308 = vmatpush1.msra.mxu0 0.0
  %1309 = vmatprep.subr.mxu0 0.0
  %1310 = vmatpush1.msra.mxu0 0.0
  %1311 = vmatprep.subr.mxu0 0.0
  %1312 = vmatpush1.msra.mxu0 0.0
  %1313 = vmatprep.subr.mxu0 0.0
  %1314 = vmatpush1.msra.mxu0 0.0
  %1315 = vmatprep.subr.mxu0 0.0
  %1316 = vmatpush1.msra.mxu0 0.0
  %1317 = vmatprep.subr.mxu0 0.0
  %1318 = vmatpush1.msra.mxu0 0.0
  %1319 = vmatprep.subr.mxu0 0.0
  %1320 = vmatpush1.msra.mxu0 0.0
  %1321 = vmatprep.subr.mxu0 0.0
  %1322 = vmatpush1.msra.mxu0 0.0
  %1323 = vmatprep.subr.mxu0 0.0
  %1324 = vmatpush1.msra.mxu0 0.0
  %1325 = vmatprep.subr.mxu0 0.0
  %1326 = vmatpush1.msra.mxu0 0.0
  %1327 = vmatprep.subr.mxu0 0.0
  %1328 = vmatpush1.msra.mxu0 0.0
  %1329 = vmatprep.subr.mxu0 0.0
  %1330 = vmatpush1.msra.mxu0 0.0
  %1331 = vmatprep.subr.mxu0 0.0
  %1332 = vmatpush1.msra.mxu0 0.0
  %1333 = vmatprep.subr.mxu0 0.0
  %1334 = vmatpush1.msra.mxu0 0.0
  %1335 = vmatprep.subr.mxu0 0.0
  %1336 = vmatpush1.msra.mxu0 0.0
  %1337 = vmatprep.subr.mxu0 0.0
  %1338 = vmatpush1.msra.mxu0 0.0
  %1339 = vmatprep.subr.mxu0 0.0
  %1340 = vmatpush1.msra.mxu0 0.0
  %1341 = vmatprep.subr.mxu0 0.0
  %1342 = vmatpush1.msra.mxu0 0.0
  %1343 = vmatprep.subr.mxu0 0.0
  %1344 = vmatpush1.msra.mxu0 0.0
  %1345 = vmatprep.subr.mxu0 0.0
  %1346 = vmatpush1.msra.mxu0 0.0
  %1347 = vmatprep.subr.mxu0 0.0
  %1348 = vmatpush1.msra.mxu0 0.0
  %1349 = vmatprep.subr.mxu0 0.0
  %1350 = vmatpush1.msra.mxu0 0.0
  %1351 = vmatprep.subr.mxu0 0.0
  %1352 = vmatpush1.msra.mxu0 0.0
  %1353 = vmatprep.mubr.f32.mxu0 0.0
  %1354 = vmatmul.mubr.f32.gmra.mrb[0].mxu0 %v1266
  %v1355 = vpop.f32.mrb[0].mxu0
  %v1356 = vadd.f32 0.0, %v1355
  %v1357 = vpop.f32.mrb[0].mxu0
  %1358 = vmatprep.mubr.f32.mxu0 0.0
  %1359 = vmatmul.mubr.f32.gmra.mrb[0].mxu0 %v1269
  %v1360 = vpop.f32.mrb[0].mxu0
  %v1361 = vadd.f32 0.0, %v1360
  %v1362 = vpop.f32.mrb[0].mxu0
  %1363 = vmatprep.mubr.f32.mxu0 0.0
  %1364 = vmatmul.mubr.f32.gmra.mrb[0].mxu0 %v1272
  %v1365 = vpop.f32.mrb[0].mxu0
  %v1366 = vadd.f32 0.0, %v1365
  %v1367 = vpop.f32.mrb[0].mxu0
  %1368 = vmatprep.mubr.f32.mxu0 0.0
  %1369 = vmatmul.mubr.f32.gmra.mrb[0].mxu0 %v1275
  %v1370 = vpop.f32.mrb[0].mxu0
  %v1371 = vadd.f32 0.0, %v1370
  %v1372 = vpop.f32.mrb[0].mxu0
  %1373 = vmatprep.mubr.f32.mxu0 0.0
  %1374 = vmatmul.mubr.f32.gmra.mrb[0].mxu0 %v1278
  %v1375 = vpop.f32.mrb[0].mxu0
  %v1376 = vadd.f32 0.0, %v1375
  %v1377 = vpop.f32.mrb[0].mxu0
  %1378 = vmatprep.mubr.f32.mxu0 0.0
  %1379 = vmatmul.mubr.f32.gmra.mrb[0].mxu0 %v1281
  %v1380 = vpop.f32.mrb[0].mxu0
  %v1381 = vadd.f32 0.0, %v1380
  %v1382 = vpop.f32.mrb[0].mxu0
  %1383 = vmatprep.mubr.f32.mxu0 0.0
  %1384 = vmatmul.mubr.f32.gmra.mrb[0].mxu0 %v1284
  %v1385 = vpop.f32.mrb[0].mxu0
  %v1386 = vadd.f32 0.0, %v1385
  %v1387 = vpop.f32.mrb[0].mxu0
  %1388 = vmatprep.mubr.f32.mxu0 0.0
  %1389 = vmatmul.mubr.f32.gmra.mrb[0].mxu0 %v1287
  %v1390 = vpop.f32.mrb[0].mxu0
  %v1391 = vadd.f32 0.0, %v1390
  %v1392 = vpop.f32.mrb[0].mxu0
  %1393 = vdwg.mxu0
  %1394 = vst.msk [vmem:[%s9] sm:$0xff] %vm447, %v1356
  %1395 = vst.msk [vmem:[%s9 + $0x8] sm:$0xff] %vm447, %v1361
  %1396 = vst.msk [vmem:[%s9 + $0x10] sm:$0xff] %vm447, %v1366
  %1397 = vst.msk [vmem:[%s9 + $0x18] sm:$0xff] %vm447, %v1371
  %1398 = vst.msk [vmem:[%s9 + $0x20] sm:$0xff] %vm447, %v1376
  %1399 = vst.msk [vmem:[%s9 + $0x28] sm:$0xff] %vm447, %v1381
  %1400 = vst.msk [vmem:[%s9 + $0x30] sm:$0xff] %vm447, %v1386
  %1401 = vst.msk [vmem:[%s9 + $0x38] sm:$0xff] %vm447, %v1391
  // Predicated region
  $region38: #{att_forward.2} parent=0 // pred_check
    _
  $region39: #{att_forward.2} parent=0 // pred_check_branch
    %1403 = sbr.rel (0) target = $region41
  $region40: #{att_forward.2} parent=0 // pred_region
    _
  $region41: #{att_forward.2} parent=0 // pred_fallthru
    _
  // Predicated region
  $region42: #{att_forward.2} parent=0 // pred_check
    _
  $region43: #{att_forward.2} parent=0 // pred_check_branch
    %1405 = sbr.rel (0) target = $region45
  $region44: #{att_forward.2} parent=0 // pred_region
    _
  $region45: #{att_forward.2} parent=0 // pred_fallthru
    _

</llo_original>
